<compile_context>
chip_gen: v5e
topology: v5e:2x2
jax: 0.10.0
libtpu: 0.0.40
codegen_flags: <defaults>
</compile_context>

<pallas_src>
import math

import jax
import jax.numpy as jnp
from jax.experimental import pallas as pl
from jax.experimental.pallas import tpu as pltpu


def _pad8(v):
    return -(-v // 8) * 8


def _pad128(v):
    return -(-v // 128) * 128


def _hw_budget():
    """Generation-aware budgets: (vmem_capacity, per-step cap, two_tensorcores)."""
    cap = None
    try:
        cap = int(pltpu.get_tpu_info().vmem_capacity_bytes)
    except Exception:
        cap = None
    kind = ""
    try:
        kind = jax.devices()[0].device_kind.lower()
    except Exception:
        pass
    if cap is None:
        cap = 64 * 1024 * 1024          # conservative default (v7x-sized VMEM)
    big = cap >= 100 * 1024 * 1024      # 128-MiB parts: v5e / v6e
    two_cores = (not big) or ("v7" in kind) or ("7x" in kind)
    step_cap = (14 if big else 6) * 1024 * 1024
    return cap, step_cap, two_cores


def _pack_rows(F):
    """Rows packed per stored lane-row so the store minor dim is a 128-multiple."""
    if F % 128 == 0:
        return 1
    return max(1, 128 // math.gcd(F, 128))


def _step_bytes(C, P, t, Wb, itemsize, k):
    """Rough padded-VMEM bytes live per grid step (blocks + relayout temps)."""
    HT, W = t * P, Wb * P
    A = C * P * P
    F = A * P
    R = t * Wb
    rows_out = max(R // k, 1)
    in_b = C * P * _pad8(HT) * _pad128(W) * itemsize
    split_b = 0 if P % 8 == 0 else C * P * t * 8 * _pad128(W) * itemsize
    tr_b = t * _pad8(W) * _pad128(A) * itemsize
    out_b = _pad8(rows_out) * _pad128(k * F) * itemsize
    # double-buffered in/out blocks + largest simultaneously-live temporaries
    return 2 * in_b + 2 * out_b + in_b + split_b + tr_b


def _choose_tile(N, C, P, Db, Hb, Wb, itemsize, k_pref, step_cap, two_cores):
    """Largest Hb-divisor tile fitting the per-step VMEM cap.

    Preference among fitting tiles:
      * 2-TensorCore balance (grid steps even, >=4) on v7x-class parts,
      * sublane-aligned tile (hb_tile*P % 8 == 0, or full H) -> free reshapes,
      * lane-dense packed store possible,
      * larger tile (fewer ~0.35us grid steps, longer contiguous DMAs).
    Falls back to hb_tile = 1 if nothing fits (block bytes grow with t).
    """
    best = None
    for t in range(1, Hb + 1):
        if Hb % t:
            continue
        k_t = k_pref if (t * Wb) % k_pref == 0 else 1
        if t > 1 and _step_bytes(C, P, t, Wb, itemsize, k_t) > step_cap:
            continue
        steps = N * Db * (Hb // t)
        if two_cores:
            balance = 2 if (steps % 2 == 0 and steps >= 4) else \
                      (1 if (steps % 2 == 0 and steps >= 2) else 0)
        else:
            balance = 2
        aligned = 1 if ((t * P) % 8 == 0 or t == Hb) else 0
        packed = 1 if k_t == k_pref else 0
        key = (balance, aligned, packed, t)
        if best is None or key > best[0]:
            best = (key, t)
    return 1 if best is None else best[1]


def _make_kernel(C, P, hb_tile, Wb, k):
    A = C * P * P            # (c, kd, kh)
    F = A * P                # one patch row
    W = Wb * P
    rows_out = (hb_tile * Wb) // k

    def kernel(x_ref, y_ref):
        # x_ref: (1, C, P, 1, hb_tile*P, W)   ~ (n, c, kd, hq, (hb,kh), (wb,kw))
        # y_ref: (1, 1, 1, rows_out, k*F)     ~ packed (hb,wb) rows x (c,kd,kh,kw)
        a = x_ref[0, :, :, 0, :, :]                      # (C, P, HT, W) aligned full load
        if hb_tile > 1:
            # ONE bulk sublane split + hb-major regroup (leading-dim copies only,
            # no per-hb unaligned slices).
            a = a.reshape(C, P, hb_tile, P, W)
            a = jnp.concatenate([a[:, :, i] for i in range(hb_tile)], axis=0)
            a = a.reshape(hb_tile, A, W)                 # rows (c,kd,kh), lanes (wb,kw)
            t = jnp.swapaxes(a, 1, 2)                    # ONE batched wide transpose -> (hb, W, A)
            u = t.reshape(hb_tile, Wb, P, A)             # (hb, wb, kw, (c,kd,kh))
            v = jnp.swapaxes(u, 2, 3)                    # (hb, wb, (c,kd,kh), kw)
        else:
            m = a.reshape(A, W)
            t = m.T                                      # (W, A)
            u = t.reshape(Wb, P, A)
            v = jnp.swapaxes(u, 1, 2)                    # (wb, (c,kd,kh), kw)
        # ONE wide, lane-dense store of every row produced by this grid step.
        y_ref[0, 0, 0, :, :] = v.reshape(rows_out, k * F)

    return kernel


def image_to_patches_3d(x, patch_size):
    """Pallas equivalent of ImageToPatches3D.forward (x: NCDHW, 5-D)."""
    assert x.ndim == 5
    N, C, D, H, W = x.shape
    P = int(patch_size)
    assert D % P == 0 and H % P == 0 and W % P == 0
    Db, Hb, Wb = D // P, H // P, W // P
    L = Db * Hb * Wb
    F = C * P ** 3
    itemsize = jnp.dtype(x.dtype).itemsize

    vmem_cap, step_cap, two_cores = _hw_budget()
    big = vmem_cap >= 100 * 1024 * 1024
    k_pref = _pack_rows(F)
    hb_best = _choose_tile(N, C, P, Db, Hb, Wb, itemsize, k_pref, step_cap, two_cores)

    def run(hb_tile, deep_pipeline):
        Hq = Hb // hb_tile
        HT = hb_tile * P
        R = hb_tile * Wb
        k = k_pref if R % k_pref == 0 else 1
        rows_out = R // k

        # Scoped-VMEM request: generation-aware, with headroom for relayout
        # temporaries; never above ~90% of physical capacity and always enough
        # for the double-buffered blocks (even when the t=1 tile is over cap).
        need = _step_bytes(C, P, hb_tile, Wb, itemsize, k)
        vmem_limit = int(vmem_cap * (0.75 if big else 0.60))
        vmem_limit = min(max(vmem_limit, int(need * 1.5)), int(vmem_cap * 0.9))
        vmem_limit = max(vmem_limit, 16 * 1024 * 1024)

        # Free contiguous split of H so the input block's minor-two dims equal
        # full array dims (no (8,128) divisibility issues).
        x6 = x.reshape(N, C, D, Hq, HT, W)

        in_block = (1, C, P, 1, HT, W)
        in_map = lambda n, db, hq: (n, 0, db, hq, 0, 0)
        if deep_pipeline:
            # Near-zero compute per step: deepen pipelining to hide DMA latency.
            in_spec = pl.BlockSpec(in_block, in_map, pipeline_mode=pl.Buffered(3))
        else:
            in_spec = pl.BlockSpec(in_block, in_map)
        out_spec = pl.BlockSpec((1, 1, 1, rows_out, k * F),
                                lambda n, db, hq: (n, db, hq, 0, 0))

        y = pl.pallas_call(
            _make_kernel(C, P, hb_tile, Wb, k),
            out_shape=jax.ShapeDtypeStruct((N, Db, Hq, rows_out, k * F), x.dtype),
            grid_spec=pltpu.PrefetchScalarGridSpec(
                num_scalar_prefetch=0,
                grid=(N, Db, Hq),
                in_specs=[in_spec],
                out_specs=out_spec,
            ),
            compiler_params=pltpu.CompilerParams(
                dimension_semantics=("parallel", "parallel", "parallel"),
                vmem_limit_bytes=int(vmem_limit),
            ),
            cost_estimate=pl.CostEstimate(
                flops=0, transcendentals=0,
                bytes_accessed=2 * x.size * itemsize),
        )(x6)

        # Free contiguous collapse back to (N, L, C*P^3).
        return y.reshape(N, L, F)

    in_bytes = C * P * _pad8(hb_best * P) * _pad128(W) * itemsize
    deep = in_bytes < 2 * 1024 * 1024

    # Graceful degradation: tuned variant -> plain double-buffering -> hb_tile=1
    # kernel (only ops used by the previously-validated version).
    attempts = [(hb_best, deep)]
    if deep:
        attempts.append((hb_best, False))
    if hb_best != 1:
        attempts.append((1, False))
    last_err = None
    for t, dp in attempts:
        try:
            return run(t, dp)
        except Exception as e:  # keep the script runnable on any TPU generation
            last_err = e
    raise last_err


def _reference(x, P):
    """Pure-JAX reference of UnfoldNd(kernel=P, stride=P) + permute(0, 2, 1)."""
    N, C, D, H, W = x.shape
    Db, Hb, Wb = D // P, H // P, W // P
    xr = x.reshape(N, C, Db, P, Hb, P, Wb, P)
    xr = jnp.transpose(xr, (0, 2, 4, 6, 1, 3, 5, 7))
    return xr.reshape(N, Db * Hb * Wb, C * P ** 3)


if __name__ == "__main__":
    key = jax.random.PRNGKey(0)

    # (shape NCDHW, patch_size)
    cases = [
        ((2, 4, 8, 8, 8), 4),     # F=256 (already a 128-multiple), hb-batched path
        ((1, 2, 4, 32, 16), 2),   # F=16 -> k=8 packed lane-dense stores, Hq split
        ((1, 2, 8, 8, 16), 8),    # P=8: fully sublane-aligned, hb_tile=1 path
    ]
    for shape, P in cases:
        key, sub = jax.random.split(key)
        x = jax.random.normal(sub, shape, dtype=jnp.float32)
        out = jax.block_until_ready(image_to_patches_3d(x, P))
        ref = _reference(x, P)
        N, C, D, H, W = shape
        assert out.shape == (N, (D // P) * (H // P) * (W // P), C * P ** 3)
        assert jnp.allclose(out, ref), f"Pallas output mismatch for {shape}, P={P}"

    print("KERNEL_OK")
</pallas_src>

<mosaic_0001>
module attributes {stable_mosaic.version = 11 : i64} {
  func.func @kernel(%arg0: i32, %arg1: i32, %arg2: i32, %arg3: memref<1x4x4x1x8x8xf32, #tpu.memory_space<vmem>>, %arg4: memref<1x1x1x4x256xf32, #tpu.memory_space<vmem>>) attributes {dimension_semantics = [#tpu.dimension_semantics<parallel>, #tpu.dimension_semantics<parallel>, #tpu.dimension_semantics<parallel>], iteration_bounds = array<i64: 2, 2, 1>, scalar_prefetch = 0 : i64, scratch_operands = 0 : i64, tpu.core_type = #tpu.core_type<tc>, window_params = [{transform_indices = @transform_0, window_bounds = array<i64: 1, 4, 4, 1, 8, 8>}, {transform_indices = @transform_1, window_bounds = array<i64: 1, 1, 1, 4, 256>}]} {
    %c0 = arith.constant 0 : index
    %c0_0 = arith.constant 0 : index
    %c0_1 = arith.constant 0 : index
    %c0_2 = arith.constant 0 : index
    %c0_3 = arith.constant 0 : index
    %c0_4 = arith.constant 0 : index
    %0 = vector.load %arg3[%c0, %c0_0, %c0_1, %c0_2, %c0_3, %c0_4] : memref<1x4x4x1x8x8xf32, #tpu.memory_space<vmem>>, vector<1x4x4x1x8x8xf32>
    %1 = vector.shape_cast %0 : vector<1x4x4x1x8x8xf32> to vector<4x4x8x8xf32>
    %2 = vector.shape_cast %1 : vector<4x4x8x8xf32> to vector<4x4x2x4x8xf32>
    %3 = vector.extract_strided_slice %2 {offsets = [0, 0, 0, 0, 0], sizes = [4, 4, 1, 4, 8], strides = [1, 1, 1, 1, 1]} : vector<4x4x2x4x8xf32> to vector<4x4x1x4x8xf32>
    %4 = vector.shape_cast %3 : vector<4x4x1x4x8xf32> to vector<4x4x4x8xf32>
    %5 = vector.extract_strided_slice %2 {offsets = [0, 0, 1, 0, 0], sizes = [4, 4, 1, 4, 8], strides = [1, 1, 1, 1, 1]} : vector<4x4x2x4x8xf32> to vector<4x4x1x4x8xf32>
    %6 = vector.shape_cast %5 : vector<4x4x1x4x8xf32> to vector<4x4x4x8xf32>
    %7 = tpu.concatenate %4, %6 in 0 : vector<4x4x4x8xf32>, vector<4x4x4x8xf32> -> vector<8x4x4x8xf32>
    %8 = vector.shape_cast %7 : vector<8x4x4x8xf32> to vector<2x64x8xf32>
    %9 = tpu.transpose %8, [0, 2, 1] : vector<2x64x8xf32> -> vector<2x8x64xf32>
    %10 = vector.shape_cast %9 : vector<2x8x64xf32> to vector<2x2x4x64xf32>
    %11 = tpu.transpose %10, [0, 1, 3, 2] : vector<2x2x4x64xf32> -> vector<2x2x64x4xf32>
    %12 = vector.shape_cast %11 : vector<2x2x64x4xf32> to vector<4x256xf32>
    %c0_5 = arith.constant 0 : index
    %c0_6 = arith.constant 0 : index
    %c0_7 = arith.constant 0 : index
    %c0_8 = arith.constant 0 : index
    %c0_9 = arith.constant 0 : index
    %13 = vector.load %arg4[%c0_5, %c0_6, %c0_7, %c0_8, %c0_9] : memref<1x1x1x4x256xf32, #tpu.memory_space<vmem>>, vector<1x1x1x4x256xf32>
    %14 = vector.shape_cast %13 : vector<1x1x1x4x256xf32> to vector<4x256xf32>
    %15 = vector.shape_cast %12 : vector<4x256xf32> to vector<1x1x1x4x256xf32>
    tpu.vector_store %arg4[%c0_5, %c0_6, %c0_7, %c0_8, %c0_9], %15 {strides = array<i32>} : memref<1x1x1x4x256xf32, #tpu.memory_space<vmem>>, vector<1x1x1x4x256xf32>,
    return
  }
  func.func @transform_0(%arg0: i32, %arg1: i32, %arg2: i32) -> (i32, i32, i32, i32, i32, i32) {
    %c0_i32 = arith.constant 0 : i32
    %c0_i32_0 = arith.constant 0 : i32
    %c0_i32_1 = arith.constant 0 : i32
    %c0_i32_2 = arith.constant 0 : i32
    return %arg0, %c0_i32, %arg1, %arg2, %c0_i32_0, %c0_i32_1 : i32, i32, i32, i32, i32, i32
  }
  func.func @transform_1(%arg0: i32, %arg1: i32, %arg2: i32) -> (i32, i32, i32, i32, i32) {
    %c0_i32 = arith.constant 0 : i32
    %c0_i32_0 = arith.constant 0 : i32
    %c0_i32_1 = arith.constant 0 : i32
    return %arg0, %arg1, %arg2, %c0_i32, %c0_i32_0 : i32, i32, i32, i32, i32
  }
}

module attributes {stable_mosaic.version = 11 : i64} {
  func.func @kernel(%arg0: i32, %arg1: i32, %arg2: i32, %arg3: memref<1x4x4x1x4x8xf32, #tpu.memory_space<vmem>>, %arg4: memref<1x1x1x2x256xf32, #tpu.memory_space<vmem>>) attributes {dimension_semantics = [#tpu.dimension_semantics<parallel>, #tpu.dimension_semantics<parallel>, #tpu.dimension_semantics<parallel>], iteration_bounds = array<i64: 2, 2, 2>, scalar_prefetch = 0 : i64, scratch_operands = 0 : i64, tpu.core_type = #tpu.core_type<tc>, window_params = [{transform_indices = @transform_0, window_bounds = array<i64: 1, 4, 4, 1, 4, 8>}, {transform_indices = @transform_1, window_bounds = array<i64: 1, 1, 1, 2, 256>}]} {
    %c0 = arith.constant 0 : index
    %c0_0 = arith.constant 0 : index
    %c0_1 = arith.constant 0 : index
    %c0_2 = arith.constant 0 : index
    %c0_3 = arith.constant 0 : index
    %c0_4 = arith.constant 0 : index
    %0 = vector.load %arg3[%c0, %c0_0, %c0_1, %c0_2, %c0_3, %c0_4] : memref<1x4x4x1x4x8xf32, #tpu.memory_space<vmem>>, vector<1x4x4x1x4x8xf32>
    %1 = vector.shape_cast %0 : vector<1x4x4x1x4x8xf32> to vector<4x4x4x8xf32>
    %2 = vector.shape_cast %1 : vector<4x4x4x8xf32> to vector<64x8xf32>
    %3 = tpu.transpose %2, [1, 0] : vector<64x8xf32> -> vector<8x64xf32>
    %4 = vector.shape_cast %3 : vector<8x64xf32> to vector<2x4x64xf32>
    %5 = tpu.transpose %4, [0, 2, 1] : vector<2x4x64xf32> -> vector<2x64x4xf32>
    %6 = vector.shape_cast %5 : vector<2x64x4xf32> to vector<2x256xf32>
    %c0_5 = arith.constant 0 : index
    %c0_6 = arith.constant 0 : index
    %c0_7 = arith.constant 0 : index
    %c0_8 = arith.constant 0 : index
    %c0_9 = arith.constant 0 : index
    %7 = vector.load %arg4[%c0_5, %c0_6, %c0_7, %c0_8, %c0_9] : memref<1x1x1x2x256xf32, #tpu.memory_space<vmem>>, vector<1x1x1x2x256xf32>
    %8 = vector.shape_cast %7 : vector<1x1x1x2x256xf32> to vector<2x256xf32>
    %9 = vector.shape_cast %6 : vector<2x256xf32> to vector<1x1x1x2x256xf32>
    tpu.vector_store %arg4[%c0_5, %c0_6, %c0_7, %c0_8, %c0_9], %9 {strides = array<i32>} : memref<1x1x1x2x256xf32, #tpu.memory_space<vmem>>, vector<1x1x1x2x256xf32>,
    return
  }
  func.func @transform_0(%arg0: i32, %arg1: i32, %arg2: i32) -> (i32, i32, i32, i32, i32, i32) {
    %c0_i32 = arith.constant 0 : i32
    %c0_i32_0 = arith.constant 0 : i32
    %c0_i32_1 = arith.constant 0 : i32
    %c0_i32_2 = arith.constant 0 : i32
    return %arg0, %c0_i32, %arg1, %arg2, %c0_i32_0, %c0_i32_1 : i32, i32, i32, i32, i32, i32
  }
  func.func @transform_1(%arg0: i32, %arg1: i32, %arg2: i32) -> (i32, i32, i32, i32, i32) {
    %c0_i32 = arith.constant 0 : i32
    %c0_i32_0 = arith.constant 0 : i32
    %c0_i32_1 = arith.constant 0 : i32
    return %arg0, %arg1, %arg2, %c0_i32, %c0_i32_0 : i32, i32, i32, i32, i32
  }
}

</mosaic_0001>

<llo_original>
// kernel: tpu_custom_call.1
$region0: #{tpu_custom_call.1}
  #allocation0 [shape = 'u32[]', space=smem, size = 0x4, offset = 0x4, fixed_abs, tag = 'smem constant byte address 0x4 - core index']
  #allocation1 [shape = 'u32[72,128]{1,0:T(1,128)}', space=vmem, size = 0x9000, scoped, tag = 'internal scratch']
  #allocation6 [shape = 's32[]', space=sflag, size = 0x4, offset = 0, fixed_abs, tag = 'sflag constant byte address 0x0 - dummy sync flag']
  %s0 = inlined_call_operand.hbm [shape: f32[2,4,8,1,8,8], index: 0, kind: input, shape index: {}]
  %s1 = inlined_call_operand.hbm [shape: f32[2,2,1,4,256], index: 1, kind: output, shape index: {}]
  %s2 = sld [smem:[#allocation0]]
  $region41: #{tpu_custom_call.1} parent=0
    _
  %s4 = ssub.s32 1, %s2
  %s5 = scalar_select 0, %s4, %s2
  $region1: #{tpu_custom_call.1} parent=0
    #allocation2 [shape = 'u8[131072]{0}', space=vmem, size = 0x20000, scoped, tag = 'input window, operand 0']
    #allocation3 [shape = 's32[2]{0}', space=sflag, size = 0x8, scoped, tag = 'scoped memory for tpu_custom_call.1']
    #allocation4 [shape = 's32[2]{0}', space=sflag, size = 0x8, scoped, tag = 'scoped memory for tpu_custom_call.1']
    #allocation5 [shape = 'u8[8192]{0}', space=vmem, size = 0x2000, scoped, tag = 'output window, operand 0']
    %6 = vsyncpa [#allocation3], 0
    %s7 = scalar_lea.sflag [#allocation3], 1
    %8 = vsyncpa %s7, 0
    %9 = vsyncpa [#allocation4], 0
    %s10 = scalar_lea.sflag [#allocation4], 1
    %11 = vsyncpa %s10, 0
    loop: start=0, step=1, limit=6
    $region2: #{tpu_custom_call.1} parent=1 // loop_pre_header
      _
    $region3: #{tpu_custom_call.1} parent=1 // loop_header
      %s13 = sphi 0, %s17
      %p14 = scmp.ge.s32.totalorder %s13, 6
      %s20 = sphi 0, %s39
      %s21 = sphi 0, %s35
      %s22 = sphi 0, %s31
      %s23 = sphi 0, %s20
      %s24 = sphi 0, %s21
      %s25 = sphi 0, %s22
      %s26 = sphi 0, %s23
      %s27 = sphi 0, %s24
      %s28 = sphi 0, %s25
      %s46 = sphi 0, %s48
      %s49 = sphi 0, %s46
      %s50 = sphi 0, %s49
      %s66 = sphi 0, %s50
      %s76 = sphi 0, %s78
      %s79 = sphi 0, %s76
      %s80 = sphi 0, %s79
      %s96 = sphi 0, %s80
    $region4: #{tpu_custom_call.1} parent=1 // loop_header_branch
      %16 = sbr.rel (%p14) target = $region8
    $region5: #{tpu_custom_call.1} parent=1 // loop_body
      %s18 = ssub.s32 %s13, 1
      %s19 = ssub.s32 %s13, 2
      %s29 = sadd.s32 1, %s22
      %p30 = scmp.ge.s32.totalorder %s29, 1
      %s31 = scalar_select %p30, 0, %s29
      %s32 = sadd.s32 1, %s21
      %s33 = scalar_select %p30, %s32, %s21
      %p34 = scmp.ge.s32.totalorder %s33, 2
      %s35 = scalar_select %p34, 0, %s33
      %s36 = sadd.s32 1, %s20
      %s37 = scalar_select %p34, %s36, %s20
      %p38 = scmp.ge.s32.totalorder %s37, 2
      %s39 = scalar_select %p38, 0, %s37
      %s40 = ssub.s32 %s20, %s39
      %s41 = ssub.s32 %s21, %s35
      %s42 = sor.u32 %s40, %s41
      %s43 = ssub.s32 %s22, %s31
      %s44 = sor.u32 %s42, %s43
      %p45 = scmp.eq.s32.totalorder %s44, 0
      %s47 = sadd.s32 %s46, 1
      %s48 = scalar_select %p45, %s46, %s47
      %p51 = pneg %p45
      %p52 = scmp.eq.s32.totalorder %s13, 3
      %p53 = por %p51, %p52
      %p54 = scmp.ne.s32.totalorder %s46, %s49
      %p55 = scmp.eq.s32.totalorder %s13, 0
      %p56 = por %p54, %p55
      %p57 = scmp.ne.s32.totalorder %s46, %s49
      %p58 = scmp.eq.s32.totalorder %s18, 3
      %p59 = por %p57, %p58
      %p60 = scmp.ne.s32.totalorder %s49, %s50
      %p61 = scmp.eq.s32.totalorder %s18, 0
      %p62 = por %p60, %p61
      %p63 = scmp.ne.s32.totalorder %s49, %s50
      %p64 = scmp.eq.s32.totalorder %s19, 3
      %p65 = por %p63, %p64
      %p67 = scmp.ne.s32.totalorder %s50, %s66
      %p68 = scmp.eq.s32.totalorder %s19, 0
      %p69 = por %p67, %p68
      %s70 = ssub.s32 %s20, %s39
      %s71 = ssub.s32 %s21, %s35
      %s72 = sor.u32 %s70, %s71
      %s73 = ssub.s32 %s22, %s31
      %s74 = sor.u32 %s72, %s73
      %p75 = scmp.eq.s32.totalorder %s74, 0
      %s77 = sadd.s32 %s76, 1
      %s78 = scalar_select %p75, %s76, %s77
      %p81 = pneg %p75
      %p82 = scmp.eq.s32.totalorder %s13, 3
      %p83 = por %p81, %p82
      %p84 = scmp.ne.s32.totalorder %s76, %s79
      %p85 = scmp.eq.s32.totalorder %s13, 0
      %p86 = por %p84, %p85
      %p87 = scmp.ne.s32.totalorder %s76, %s79
      %p88 = scmp.eq.s32.totalorder %s18, 3
      %p89 = por %p87, %p88
      %p90 = scmp.ne.s32.totalorder %s79, %s80
      %p91 = scmp.eq.s32.totalorder %s18, 0
      %p92 = por %p90, %p91
      %p93 = scmp.ne.s32.totalorder %s79, %s80
      %p94 = scmp.eq.s32.totalorder %s19, 3
      %p95 = por %p93, %p94
      %p97 = scmp.ne.s32.totalorder %s80, %s96
      %p98 = scmp.eq.s32.totalorder %s19, 0
      %p99 = por %p97, %p98
      %p100 = scmp.le.s32.totalorder 1, %s13
      %p101 = scmp.lt.s32.totalorder %s13, 5
      %p102 = pnand %p100, %p101
      %p103 = pneg %p102
      // Predicated region
      $region9: #{tpu_custom_call.1} parent=5 // pred_check
        _
      $region10: #{tpu_custom_call.1} parent=5 // pred_check_branch
        %105 = sbr.rel (%p102) target = $region12
      $region11: #{tpu_custom_call.1} parent=5 // pred_region
        %s106 = ssub.s32 %s13, 1
      $region12: #{tpu_custom_call.1} parent=5 // pred_fallthru
        _
      %p107 = scmp.lt.s32.totalorder %s13, 4
      // Predicated region
      $region13: #{tpu_custom_call.1} parent=5 // pred_check
        %p108 = pneg %p107
      $region14: #{tpu_custom_call.1} parent=5 // pred_check_branch
        %110 = sbr.rel (%p108) target = $region16
      $region15: #{tpu_custom_call.1} parent=5 // pred_region
        // Predicated region
        $region17: #{tpu_custom_call.1} parent=15 // pred_check
          %p111 = pneg %p56
        $region18: #{tpu_custom_call.1} parent=15 // pred_check_branch
          %113 = sbr.rel (%p111) target = $region20
        $region19: #{tpu_custom_call.1} parent=15 // pred_region
          #allocation7 [shape = 'u32[6]{0}', space=smem, size = 0x18, scoped, tag = 'DMA stride descriptor']
          %s114 = sand.u32 %s46, 1
          %s115 = scalar_lea.sflag [#allocation3], %s114
          %s116 = sand.u32 %s46, 1
          %s117 = smul.addr %s116, 128
          %s118 = scalar_lea.vmem [#allocation2], %s117
          %s119 = smul.u32 4, %s21
          %121 = vsyncadd %s115, 0
          %s122 = sadd.s32 %s22, %s119
          %s123 = smul.addr %s20, 32
          %s124 = sadd.s32 %s122, %s123
          %s125 = smul.addr %s124, 8
          %s126 = scalar_lea.hbm %s0, %s125
          %s128 = sshll.u32 1, 14
          %s129 = sxor.u32 4294967295, %s128
          %s131 = sld [smem:[#allocation0]]
          %s132 = sadd.s32 2, %s131
          %s134 = sshll.u32 7, 26
          %s135 = sxor.u32 4294967295, %s134
          %s136 = sand.u32 0, %s135
          %s137 = sshll.u32 %s132, 26
          %s138 = sor.u32 %s136, %s137
          %s139 = sshll.u32 %s126, 4
          %s140 = int_to_ptr.hbm [resolvable:$true] %s139
          %s141 = sshll.u32 %s118, 4
          %s142 = int_to_ptr.vmem [resolvable:$true] %s141
          %148 = sst [smem:[#allocation7]] 1024
          %s149 = scalar_lea.smem [#allocation7], 1
          %150 = sst [smem:[%s149]] 512
          %s151 = scalar_lea.smem [#allocation7], 2
          %152 = sst [smem:[%s151]] 4
          %s153 = scalar_lea.smem [#allocation7], 3
          %154 = sst [smem:[%s153]] 128
          %s155 = scalar_lea.smem [#allocation7], 4
          %156 = sst [smem:[%s155]] 128
          %s157 = scalar_lea.smem [#allocation7], 5
          %158 = sst [smem:[%s157]] 8
          %160 = dma.general %s140, 2048, %s142, %s115, [#allocation6], [#allocation7], %s138, 0
        $region20: #{tpu_custom_call.1} parent=15 // pred_fallthru
          _
      $region16: #{tpu_custom_call.1} parent=5 // pred_fallthru
        _
      %p161 = scmp.le.s32.totalorder 1, %s13
      %p162 = scmp.lt.s32.totalorder %s13, 5
      %p163 = pnand %p161, %p162
      %p164 = pneg %p163
      // Predicated region
      $region21: #{tpu_custom_call.1} parent=5 // pred_check
        _
      $region22: #{tpu_custom_call.1} parent=5 // pred_check_branch
        %166 = sbr.rel (%p163) target = $region24
      $region23: #{tpu_custom_call.1} parent=5 // pred_region
        %s167 = ssub.s32 %s13, 1
        %s168 = sand.u32 %s49, 1
        %s169 = scalar_lea.sflag [#allocation3], %s168
        %s170 = sand.u32 %s49, 1
        %s171 = smul.addr %s170, 128
        %s172 = scalar_lea.vmem [#allocation2], %s171
        // Predicated region
        $region25: #{tpu_custom_call.1} parent=23 // pred_check
          %p173 = pneg %p62
        $region26: #{tpu_custom_call.1} parent=23 // pred_check_branch
          %175 = sbr.rel (%p173) target = $region28
        $region27: #{tpu_custom_call.1} parent=23 // pred_region
          %177 = dma.done %s169, 2048
        $region28: #{tpu_custom_call.1} parent=23 // pred_fallthru
          _
        %s178 = sand.u32 %s49, 1
        %s179 = scalar_lea.sflag [#allocation3], %s178
        %s180 = sand.u32 %s49, 1
        %s181 = smul.addr %s180, 128
        %s182 = scalar_lea.vmem [#allocation2], %s181
        %p183 = pneg %p62
        %p184 = pneg %p59
        %p185 = pneg %p92
        %p186 = pneg %p89
        %s187 = sand.u32 %s79, 1
        %s188 = scalar_lea.sflag [#allocation4], %s187
        %s189 = sand.u32 %s79, 1
        %s190 = smul.addr %s189, 8
        %s191 = scalar_lea.vmem [#allocation5], %s190
        %s192 = smul.u32 4, %s24
        %v193 = vld [vmem:[%s172] sm:$0xff]
        %v194 = vld [vmem:[%s172 + $0x8] sm:$0xff]
        %v195 = vld [vmem:[%s172 + $0x10] sm:$0xff]
        %v196 = vld [vmem:[%s172 + $0x18] sm:$0xff]
        %v197 = vld [vmem:[%s172 + $0x20] sm:$0xff]
        %v198 = vld [vmem:[%s172 + $0x28] sm:$0xff]
        %v199 = vld [vmem:[%s172 + $0x30] sm:$0xff]
        %v200 = vld [vmem:[%s172 + $0x38] sm:$0xff]
        %v201 = vld [vmem:[%s172 + $0x40] sm:$0xff]
        %v202 = vld [vmem:[%s172 + $0x48] sm:$0xff]
        %v203 = vld [vmem:[%s172 + $0x50] sm:$0xff]
        %v204 = vld [vmem:[%s172 + $0x58] sm:$0xff]
        %v205 = vld [vmem:[%s172 + $0x60] sm:$0xff]
        %v206 = vld [vmem:[%s172 + $0x68] sm:$0xff]
        %v207 = vld [vmem:[%s172 + $0x70] sm:$0xff]
        %v208 = vld [vmem:[%s172 + $0x78] sm:$0xff]
        %v225 = vrot.slane %v193, 4
        %v226 = vrot.slane %v194, 4
        %v227 = vrot.slane %v195, 4
        %v228 = vrot.slane %v196, 4
        %v229 = vrot.slane %v197, 4
        %v230 = vrot.slane %v198, 4
        %v231 = vrot.slane %v199, 4
        %v232 = vrot.slane %v200, 4
        %v233 = vrot.slane %v201, 4
        %v234 = vrot.slane %v202, 4
        %v235 = vrot.slane %v203, 4
        %v236 = vrot.slane %v204, 4
        %v237 = vrot.slane %v205, 4
        %v238 = vrot.slane %v206, 4
        %v239 = vrot.slane %v207, 4
        %v240 = vrot.slane %v208, 4
        %241 = vst [vmem:[#allocation1] ss:$2 sm:$0xff] %v193
        %s242 = scalar_lea.vmem [#allocation1], 1
        %243 = vst [vmem:[%s242] ss:$2 sm:$0xff] %v194
        %s244 = scalar_lea.vmem [#allocation1], 16
        %245 = vst [vmem:[%s244] ss:$2 sm:$0xff] %v195
        %s246 = scalar_lea.vmem [#allocation1], 17
        %247 = vst [vmem:[%s246] ss:$2 sm:$0xff] %v196
        %s248 = scalar_lea.vmem [#allocation1], 32
        %249 = vst [vmem:[%s248] ss:$2 sm:$0xff] %v197
        %s250 = scalar_lea.vmem [#allocation1], 33
        %251 = vst [vmem:[%s250] ss:$2 sm:$0xff] %v198
        %s252 = scalar_lea.vmem [#allocation1], 48
        %253 = vst [vmem:[%s252] ss:$2 sm:$0xff] %v199
        %s254 = scalar_lea.vmem [#allocation1], 49
        %255 = vst [vmem:[%s254] ss:$2 sm:$0xff] %v200
        %v256 = vld.sshfl [vmem:[#allocation1] sm:$0xff pattern:$0x75316420]
        %v257 = vld.sshfl [vmem:[#allocation1 + $0x10] sm:$0xff pattern:$0x75316420]
        %v258 = vld.sshfl [vmem:[#allocation1 + $0x20] sm:$0xff pattern:$0x75316420]
        %v259 = vld.sshfl [vmem:[#allocation1 + $0x30] sm:$0xff pattern:$0x75316420]
        %260 = vst [vmem:[#allocation1] ss:$2 sm:$0xff] %v201
        %261 = vst [vmem:[%s242] ss:$2 sm:$0xff] %v202
        %262 = vst [vmem:[%s244] ss:$2 sm:$0xff] %v203
        %263 = vst [vmem:[%s246] ss:$2 sm:$0xff] %v204
        %264 = vst [vmem:[%s248] ss:$2 sm:$0xff] %v205
        %265 = vst [vmem:[%s250] ss:$2 sm:$0xff] %v206
        %266 = vst [vmem:[%s252] ss:$2 sm:$0xff] %v207
        %267 = vst [vmem:[%s254] ss:$2 sm:$0xff] %v208
        %v268 = vld.sshfl [vmem:[#allocation1] sm:$0xff pattern:$0x75316420]
        %v269 = vld.sshfl [vmem:[#allocation1 + $0x10] sm:$0xff pattern:$0x75316420]
        %v270 = vld.sshfl [vmem:[#allocation1 + $0x20] sm:$0xff pattern:$0x75316420]
        %v271 = vld.sshfl [vmem:[#allocation1 + $0x30] sm:$0xff pattern:$0x75316420]
        %272 = vst [vmem:[#allocation1] ss:$2 sm:$0xff] %v225
        %273 = vst [vmem:[%s242] ss:$2 sm:$0xff] %v226
        %274 = vst [vmem:[%s244] ss:$2 sm:$0xff] %v227
        %275 = vst [vmem:[%s246] ss:$2 sm:$0xff] %v228
        %276 = vst [vmem:[%s248] ss:$2 sm:$0xff] %v229
        %277 = vst [vmem:[%s250] ss:$2 sm:$0xff] %v230
        %278 = vst [vmem:[%s252] ss:$2 sm:$0xff] %v231
        %279 = vst [vmem:[%s254] ss:$2 sm:$0xff] %v232
        %v280 = vld.sshfl [vmem:[#allocation1] sm:$0xff pattern:$0x75316420]
        %v281 = vld.sshfl [vmem:[#allocation1 + $0x10] sm:$0xff pattern:$0x75316420]
        %v282 = vld.sshfl [vmem:[#allocation1 + $0x20] sm:$0xff pattern:$0x75316420]
        %v283 = vld.sshfl [vmem:[#allocation1 + $0x30] sm:$0xff pattern:$0x75316420]
        %284 = vst [vmem:[#allocation1] ss:$2 sm:$0xff] %v233
        %285 = vst [vmem:[%s242] ss:$2 sm:$0xff] %v234
        %286 = vst [vmem:[%s244] ss:$2 sm:$0xff] %v235
        %287 = vst [vmem:[%s246] ss:$2 sm:$0xff] %v236
        %288 = vst [vmem:[%s248] ss:$2 sm:$0xff] %v237
        %289 = vst [vmem:[%s250] ss:$2 sm:$0xff] %v238
        %290 = vst [vmem:[%s252] ss:$2 sm:$0xff] %v239
        %291 = vst [vmem:[%s254] ss:$2 sm:$0xff] %v240
        %v292 = vld.sshfl [vmem:[#allocation1] sm:$0xff pattern:$0x75316420]
        %v293 = vld.sshfl [vmem:[#allocation1 + $0x10] sm:$0xff pattern:$0x75316420]
        %v294 = vld.sshfl [vmem:[#allocation1 + $0x20] sm:$0xff pattern:$0x75316420]
        %v295 = vld.sshfl [vmem:[#allocation1 + $0x30] sm:$0xff pattern:$0x75316420]
        %312 = vxpose.xlu0.b32.start [1/16] %v256, 128
        %313 = vxpose.xlu0.b32.cont [2/16] %v257, 128
        %314 = vxpose.xlu0.b32.cont [3/16] %v258, 128
        %315 = vxpose.xlu0.b32.cont [4/16] %v259, 128
        %316 = vxpose.xlu0.b32.cont [5/16] %v268, 128
        %317 = vxpose.xlu0.b32.cont [6/16] %v269, 128
        %318 = vxpose.xlu0.b32.cont [7/16] %v270, 128
        %319 = vxpose.xlu0.b32.cont [8/16] %v271, 128
        %320 = vxpose.xlu0.b32.cont [9/16] 0.0, 128
        %321 = vxpose.xlu0.b32.cont [10/16] 0.0, 128
        %322 = vxpose.xlu0.b32.cont [11/16] 0.0, 128
        %323 = vxpose.xlu0.b32.cont [12/16] 0.0, 128
        %324 = vxpose.xlu0.b32.cont [13/16] 0.0, 128
        %325 = vxpose.xlu0.b32.cont [14/16] 0.0, 128
        %326 = vxpose.xlu0.b32.cont [15/16] 0.0, 128
        %327 = vxpose.xlu0.b32.end [16/16] 0.0, 128
        %v328 = vpop.trf.xlu0
        %v329 = vpop.trf.xlu0
        %v330 = vpop.trf.xlu0
        %v331 = vpop.trf.xlu0
        %v332 = vpop.trf.xlu0
        %v333 = vpop.trf.xlu0
        %v334 = vpop.trf.xlu0
        %v335 = vpop.trf.xlu0
        %v336 = vpop.trf.xlu0
        %v337 = vpop.trf.xlu0
        %v338 = vpop.trf.xlu0
        %v339 = vpop.trf.xlu0
        %v340 = vpop.trf.xlu0
        %v341 = vpop.trf.xlu0
        %v342 = vpop.trf.xlu0
        %v343 = vpop.trf.xlu0
        %344 = vxpose.xlu0.b32.start [1/16] %v280, 128
        %345 = vxpose.xlu0.b32.cont [2/16] %v281, 128
        %346 = vxpose.xlu0.b32.cont [3/16] %v282, 128
        %347 = vxpose.xlu0.b32.cont [4/16] %v283, 128
        %348 = vxpose.xlu0.b32.cont [5/16] %v292, 128
        %349 = vxpose.xlu0.b32.cont [6/16] %v293, 128
        %350 = vxpose.xlu0.b32.cont [7/16] %v294, 128
        %351 = vxpose.xlu0.b32.cont [8/16] %v295, 128
        %352 = vxpose.xlu0.b32.cont [9/16] 0.0, 128
        %353 = vxpose.xlu0.b32.cont [10/16] 0.0, 128
        %354 = vxpose.xlu0.b32.cont [11/16] 0.0, 128
        %355 = vxpose.xlu0.b32.cont [12/16] 0.0, 128
        %356 = vxpose.xlu0.b32.cont [13/16] 0.0, 128
        %357 = vxpose.xlu0.b32.cont [14/16] 0.0, 128
        %358 = vxpose.xlu0.b32.cont [15/16] 0.0, 128
        %359 = vxpose.xlu0.b32.end [16/16] 0.0, 128
        %v360 = vpop.trf.xlu0
        %v361 = vpop.trf.xlu0
        %v362 = vpop.trf.xlu0
        %v363 = vpop.trf.xlu0
        %v364 = vpop.trf.xlu0
        %v365 = vpop.trf.xlu0
        %v366 = vpop.trf.xlu0
        %v367 = vpop.trf.xlu0
        %v368 = vpop.trf.xlu0
        %v369 = vpop.trf.xlu0
        %v370 = vpop.trf.xlu0
        %v371 = vpop.trf.xlu0
        %v372 = vpop.trf.xlu0
        %v373 = vpop.trf.xlu0
        %v374 = vpop.trf.xlu0
        %v375 = vpop.trf.xlu0
        %v378 = vrot.slane %v328, 4
        %v379 = vrot.slane %v360, 4
        %382 = vxpose.xlu0.b32.start [1/16] %v328, 128
        %383 = vxpose.xlu0.b32.cont [2/16] 0.0, 128
        %384 = vxpose.xlu0.b32.cont [3/16] 0.0, 128
        %385 = vxpose.xlu0.b32.cont [4/16] 0.0, 128
        %386 = vxpose.xlu0.b32.cont [5/16] 0.0, 128
        %387 = vxpose.xlu0.b32.cont [6/16] 0.0, 128
        %388 = vxpose.xlu0.b32.cont [7/16] 0.0, 128
        %389 = vxpose.xlu0.b32.cont [8/16] 0.0, 128
        %390 = vxpose.xlu0.b32.cont [9/16] 0.0, 128
        %391 = vxpose.xlu0.b32.cont [10/16] 0.0, 128
        %392 = vxpose.xlu0.b32.cont [11/16] 0.0, 128
        %393 = vxpose.xlu0.b32.cont [12/16] 0.0, 128
        %394 = vxpose.xlu0.b32.cont [13/16] 0.0, 128
        %395 = vxpose.xlu0.b32.cont [14/16] 0.0, 128
        %396 = vxpose.xlu0.b32.cont [15/16] 0.0, 128
        %397 = vxpose.xlu0.b32.end [16/16] 0.0, 128
        %v398 = vpop.trf.xlu0
        %v399 = vpop.trf.xlu0
        %v400 = vpop.trf.xlu0
        %v401 = vpop.trf.xlu0
        %v402 = vpop.trf.xlu0
        %v403 = vpop.trf.xlu0
        %v404 = vpop.trf.xlu0
        %v405 = vpop.trf.xlu0
        %v406 = vpop.trf.xlu0
        %v407 = vpop.trf.xlu0
        %v408 = vpop.trf.xlu0
        %v409 = vpop.trf.xlu0
        %v410 = vpop.trf.xlu0
        %v411 = vpop.trf.xlu0
        %v412 = vpop.trf.xlu0
        %v413 = vpop.trf.xlu0
        %414 = vxpose.xlu0.b32.start [1/16] %v378, 128
        %415 = vxpose.xlu0.b32.cont [2/16] 0.0, 128
        %416 = vxpose.xlu0.b32.cont [3/16] 0.0, 128
        %417 = vxpose.xlu0.b32.cont [4/16] 0.0, 128
        %418 = vxpose.xlu0.b32.cont [5/16] 0.0, 128
        %419 = vxpose.xlu0.b32.cont [6/16] 0.0, 128
        %420 = vxpose.xlu0.b32.cont [7/16] 0.0, 128
        %421 = vxpose.xlu0.b32.cont [8/16] 0.0, 128
        %422 = vxpose.xlu0.b32.cont [9/16] 0.0, 128
        %423 = vxpose.xlu0.b32.cont [10/16] 0.0, 128
        %424 = vxpose.xlu0.b32.cont [11/16] 0.0, 128
        %425 = vxpose.xlu0.b32.cont [12/16] 0.0, 128
        %426 = vxpose.xlu0.b32.cont [13/16] 0.0, 128
        %427 = vxpose.xlu0.b32.cont [14/16] 0.0, 128
        %428 = vxpose.xlu0.b32.cont [15/16] 0.0, 128
        %429 = vxpose.xlu0.b32.end [16/16] 0.0, 128
        %v430 = vpop.trf.xlu0
        %v431 = vpop.trf.xlu0
        %v432 = vpop.trf.xlu0
        %v433 = vpop.trf.xlu0
        %v434 = vpop.trf.xlu0
        %v435 = vpop.trf.xlu0
        %v436 = vpop.trf.xlu0
        %v437 = vpop.trf.xlu0
        %v438 = vpop.trf.xlu0
        %v439 = vpop.trf.xlu0
        %v440 = vpop.trf.xlu0
        %v441 = vpop.trf.xlu0
        %v442 = vpop.trf.xlu0
        %v443 = vpop.trf.xlu0
        %v444 = vpop.trf.xlu0
        %v445 = vpop.trf.xlu0
        %446 = vxpose.xlu0.b32.start [1/16] %v360, 128
        %447 = vxpose.xlu0.b32.cont [2/16] 0.0, 128
        %448 = vxpose.xlu0.b32.cont [3/16] 0.0, 128
        %449 = vxpose.xlu0.b32.cont [4/16] 0.0, 128
        %450 = vxpose.xlu0.b32.cont [5/16] 0.0, 128
        %451 = vxpose.xlu0.b32.cont [6/16] 0.0, 128
        %452 = vxpose.xlu0.b32.cont [7/16] 0.0, 128
        %453 = vxpose.xlu0.b32.cont [8/16] 0.0, 128
        %454 = vxpose.xlu0.b32.cont [9/16] 0.0, 128
        %455 = vxpose.xlu0.b32.cont [10/16] 0.0, 128
        %456 = vxpose.xlu0.b32.cont [11/16] 0.0, 128
        %457 = vxpose.xlu0.b32.cont [12/16] 0.0, 128
        %458 = vxpose.xlu0.b32.cont [13/16] 0.0, 128
        %459 = vxpose.xlu0.b32.cont [14/16] 0.0, 128
        %460 = vxpose.xlu0.b32.cont [15/16] 0.0, 128
        %461 = vxpose.xlu0.b32.end [16/16] 0.0, 128
        %v462 = vpop.trf.xlu0
        %v463 = vpop.trf.xlu0
        %v464 = vpop.trf.xlu0
        %v465 = vpop.trf.xlu0
        %v466 = vpop.trf.xlu0
        %v467 = vpop.trf.xlu0
        %v468 = vpop.trf.xlu0
        %v469 = vpop.trf.xlu0
        %v470 = vpop.trf.xlu0
        %v471 = vpop.trf.xlu0
        %v472 = vpop.trf.xlu0
        %v473 = vpop.trf.xlu0
        %v474 = vpop.trf.xlu0
        %v475 = vpop.trf.xlu0
        %v476 = vpop.trf.xlu0
        %v477 = vpop.trf.xlu0
        %478 = vxpose.xlu0.b32.start [1/16] %v379, 128
        %479 = vxpose.xlu0.b32.cont [2/16] 0.0, 128
        %480 = vxpose.xlu0.b32.cont [3/16] 0.0, 128
        %481 = vxpose.xlu0.b32.cont [4/16] 0.0, 128
        %482 = vxpose.xlu0.b32.cont [5/16] 0.0, 128
        %483 = vxpose.xlu0.b32.cont [6/16] 0.0, 128
        %484 = vxpose.xlu0.b32.cont [7/16] 0.0, 128
        %485 = vxpose.xlu0.b32.cont [8/16] 0.0, 128
        %486 = vxpose.xlu0.b32.cont [9/16] 0.0, 128
        %487 = vxpose.xlu0.b32.cont [10/16] 0.0, 128
        %488 = vxpose.xlu0.b32.cont [11/16] 0.0, 128
        %489 = vxpose.xlu0.b32.cont [12/16] 0.0, 128
        %490 = vxpose.xlu0.b32.cont [13/16] 0.0, 128
        %491 = vxpose.xlu0.b32.cont [14/16] 0.0, 128
        %492 = vxpose.xlu0.b32.cont [15/16] 0.0, 128
        %493 = vxpose.xlu0.b32.end [16/16] 0.0, 128
        %v494 = vpop.trf.xlu0
        %v495 = vpop.trf.xlu0
        %v496 = vpop.trf.xlu0
        %v497 = vpop.trf.xlu0
        %v498 = vpop.trf.xlu0
        %v499 = vpop.trf.xlu0
        %v500 = vpop.trf.xlu0
        %v501 = vpop.trf.xlu0
        %v502 = vpop.trf.xlu0
        %v503 = vpop.trf.xlu0
        %v504 = vpop.trf.xlu0
        %v505 = vpop.trf.xlu0
        %v506 = vpop.trf.xlu0
        %v507 = vpop.trf.xlu0
        %v508 = vpop.trf.xlu0
        %v509 = vpop.trf.xlu0
        %v510 = vrot.slane %v462, 4
        %vm511 = vcmask 1047556
        %v512 = vsel %vm511, %v510, %v398
        %v513 = vrot.slane %v398, 4
        %v514 = vsel %vm511, %v462, %v513
        %v516 = vunpack.c.l.s4 1983009808
        %v517 = vunpack.c.0.s8 %v516
        %v518 = vperm.slane %v512, %v517
        %v520 = vunpack.c.l.s4 1983009808
        %v521 = vunpack.c.0.s8 %v520
        %v522 = vperm.slane %v514, %v521
        %v523 = vrot.slane %v494, 4
        %v524 = vsel %vm511, %v523, %v430
        %v525 = vrot.slane %v430, 4
        %v526 = vsel %vm511, %v494, %v525
        %v528 = vunpack.c.l.s4 1983009808
        %v529 = vunpack.c.0.s8 %v528
        %v530 = vperm.slane %v524, %v529
        %v532 = vunpack.c.l.s4 1983009808
        %v533 = vunpack.c.0.s8 %v532
        %v534 = vperm.slane %v526, %v533
        %v535 = vrot.slane %v530, 4
        %v536 = vsel %vm511, %v535, %v518
        %v537 = vrot.slane %v518, 4
        %v538 = vsel %vm511, %v530, %v537
        %v540 = vunpack.c.l.s4 1934713408
        %v541 = vunpack.c.0.s8 %v540
        %v542 = vperm.slane %v536, %v541
        %v544 = vunpack.c.l.s4 1934713408
        %v545 = vunpack.c.0.s8 %v544
        %v546 = vperm.slane %v538, %v545
        %v547 = vrot.slane %v534, 4
        %v548 = vsel %vm511, %v547, %v522
        %v549 = vrot.slane %v522, 4
        %v550 = vsel %vm511, %v534, %v549
        %v552 = vunpack.c.l.s4 1934713408
        %v553 = vunpack.c.0.s8 %v552
        %v554 = vperm.slane %v548, %v553
        %v556 = vunpack.c.l.s4 1934713408
        %v557 = vunpack.c.0.s8 %v556
        %v558 = vperm.slane %v550, %v557
        %v559 = vrot.slane %v542, 4
        %v560 = vsel %vm511, 0.0, %v559
        %v561 = vrot.slane %v546, 4
        %v562 = vsel %vm511, 0.0, %v561
        %v563 = vrot.slane %v554, 4
        %v564 = vsel %vm511, 0.0, %v563
        %v565 = vrot.slane %v558, 4
        %v566 = vsel %vm511, 0.0, %v565
        %v567 = vrot.slane %v463, 4
        %v568 = vsel %vm511, %v567, %v399
        %v569 = vrot.slane %v399, 4
        %v570 = vsel %vm511, %v463, %v569
        %v572 = vunpack.c.l.s4 1983009808
        %v573 = vunpack.c.0.s8 %v572
        %v574 = vperm.slane %v568, %v573
        %v576 = vunpack.c.l.s4 1983009808
        %v577 = vunpack.c.0.s8 %v576
        %v578 = vperm.slane %v570, %v577
        %v579 = vrot.slane %v495, 4
        %v580 = vsel %vm511, %v579, %v431
        %v581 = vrot.slane %v431, 4
        %v582 = vsel %vm511, %v495, %v581
        %v584 = vunpack.c.l.s4 1983009808
        %v585 = vunpack.c.0.s8 %v584
        %v586 = vperm.slane %v580, %v585
        %v588 = vunpack.c.l.s4 1983009808
        %v589 = vunpack.c.0.s8 %v588
        %v590 = vperm.slane %v582, %v589
        %v591 = vrot.slane %v586, 4
        %v592 = vsel %vm511, %v591, %v574
        %v593 = vrot.slane %v574, 4
        %v594 = vsel %vm511, %v586, %v593
        %v596 = vunpack.c.l.s4 1934713408
        %v597 = vunpack.c.0.s8 %v596
        %v598 = vperm.slane %v592, %v597
        %v600 = vunpack.c.l.s4 1934713408
        %v601 = vunpack.c.0.s8 %v600
        %v602 = vperm.slane %v594, %v601
        %v603 = vrot.slane %v590, 4
        %v604 = vsel %vm511, %v603, %v578
        %v605 = vrot.slane %v578, 4
        %v606 = vsel %vm511, %v590, %v605
        %v608 = vunpack.c.l.s4 1934713408
        %v609 = vunpack.c.0.s8 %v608
        %v610 = vperm.slane %v604, %v609
        %v612 = vunpack.c.l.s4 1934713408
        %v613 = vunpack.c.0.s8 %v612
        %v614 = vperm.slane %v606, %v613
        %v615 = vrot.slane %v598, 4
        %v616 = vsel %vm511, 0.0, %v615
        %v617 = vrot.slane %v602, 4
        %v618 = vsel %vm511, 0.0, %v617
        %v619 = vrot.slane %v610, 4
        %v620 = vsel %vm511, 0.0, %v619
        %v621 = vrot.slane %v614, 4
        %v622 = vsel %vm511, 0.0, %v621
        %v623 = vrot.slane %v464, 4
        %v624 = vsel %vm511, %v623, %v400
        %v625 = vrot.slane %v400, 4
        %v626 = vsel %vm511, %v464, %v625
        %v628 = vunpack.c.l.s4 1983009808
        %v629 = vunpack.c.0.s8 %v628
        %v630 = vperm.slane %v624, %v629
        %v632 = vunpack.c.l.s4 1983009808
        %v633 = vunpack.c.0.s8 %v632
        %v634 = vperm.slane %v626, %v633
        %v635 = vrot.slane %v496, 4
        %v636 = vsel %vm511, %v635, %v432
        %v637 = vrot.slane %v432, 4
        %v638 = vsel %vm511, %v496, %v637
        %v640 = vunpack.c.l.s4 1983009808
        %v641 = vunpack.c.0.s8 %v640
        %v642 = vperm.slane %v636, %v641
        %v644 = vunpack.c.l.s4 1983009808
        %v645 = vunpack.c.0.s8 %v644
        %v646 = vperm.slane %v638, %v645
        %v647 = vrot.slane %v642, 4
        %v648 = vsel %vm511, %v647, %v630
        %v649 = vrot.slane %v630, 4
        %v650 = vsel %vm511, %v642, %v649
        %v652 = vunpack.c.l.s4 1934713408
        %v653 = vunpack.c.0.s8 %v652
        %v654 = vperm.slane %v648, %v653
        %v656 = vunpack.c.l.s4 1934713408
        %v657 = vunpack.c.0.s8 %v656
        %v658 = vperm.slane %v650, %v657
        %v659 = vrot.slane %v646, 4
        %v660 = vsel %vm511, %v659, %v634
        %v661 = vrot.slane %v634, 4
        %v662 = vsel %vm511, %v646, %v661
        %v664 = vunpack.c.l.s4 1934713408
        %v665 = vunpack.c.0.s8 %v664
        %v666 = vperm.slane %v660, %v665
        %v668 = vunpack.c.l.s4 1934713408
        %v669 = vunpack.c.0.s8 %v668
        %v670 = vperm.slane %v662, %v669
        %v671 = vrot.slane %v654, 4
        %v672 = vsel %vm511, 0.0, %v671
        %v673 = vrot.slane %v658, 4
        %v674 = vsel %vm511, 0.0, %v673
        %v675 = vrot.slane %v666, 4
        %v676 = vsel %vm511, 0.0, %v675
        %v677 = vrot.slane %v670, 4
        %v678 = vsel %vm511, 0.0, %v677
        %v679 = vrot.slane %v465, 4
        %v680 = vsel %vm511, %v679, %v401
        %v681 = vrot.slane %v401, 4
        %v682 = vsel %vm511, %v465, %v681
        %v684 = vunpack.c.l.s4 1983009808
        %v685 = vunpack.c.0.s8 %v684
        %v686 = vperm.slane %v680, %v685
        %v688 = vunpack.c.l.s4 1983009808
        %v689 = vunpack.c.0.s8 %v688
        %v690 = vperm.slane %v682, %v689
        %v691 = vrot.slane %v497, 4
        %v692 = vsel %vm511, %v691, %v433
        %v693 = vrot.slane %v433, 4
        %v694 = vsel %vm511, %v497, %v693
        %v696 = vunpack.c.l.s4 1983009808
        %v697 = vunpack.c.0.s8 %v696
        %v698 = vperm.slane %v692, %v697
        %v700 = vunpack.c.l.s4 1983009808
        %v701 = vunpack.c.0.s8 %v700
        %v702 = vperm.slane %v694, %v701
        %v703 = vrot.slane %v698, 4
        %v704 = vsel %vm511, %v703, %v686
        %v705 = vrot.slane %v686, 4
        %v706 = vsel %vm511, %v698, %v705
        %v708 = vunpack.c.l.s4 1934713408
        %v709 = vunpack.c.0.s8 %v708
        %v710 = vperm.slane %v704, %v709
        %v712 = vunpack.c.l.s4 1934713408
        %v713 = vunpack.c.0.s8 %v712
        %v714 = vperm.slane %v706, %v713
        %v715 = vrot.slane %v702, 4
        %v716 = vsel %vm511, %v715, %v690
        %v717 = vrot.slane %v690, 4
        %v718 = vsel %vm511, %v702, %v717
        %v720 = vunpack.c.l.s4 1934713408
        %v721 = vunpack.c.0.s8 %v720
        %v722 = vperm.slane %v716, %v721
        %v724 = vunpack.c.l.s4 1934713408
        %v725 = vunpack.c.0.s8 %v724
        %v726 = vperm.slane %v718, %v725
        %v727 = vrot.slane %v710, 4
        %v728 = vsel %vm511, 0.0, %v727
        %v729 = vrot.slane %v714, 4
        %v730 = vsel %vm511, 0.0, %v729
        %v731 = vrot.slane %v722, 4
        %v732 = vsel %vm511, 0.0, %v731
        %v733 = vrot.slane %v726, 4
        %v734 = vsel %vm511, 0.0, %v733
        %v735 = vrot.slane %v466, 4
        %v736 = vsel %vm511, %v735, %v402
        %v737 = vrot.slane %v402, 4
        %v738 = vsel %vm511, %v466, %v737
        %v740 = vunpack.c.l.s4 1983009808
        %v741 = vunpack.c.0.s8 %v740
        %v742 = vperm.slane %v736, %v741
        %v744 = vunpack.c.l.s4 1983009808
        %v745 = vunpack.c.0.s8 %v744
        %v746 = vperm.slane %v738, %v745
        %v747 = vrot.slane %v498, 4
        %v748 = vsel %vm511, %v747, %v434
        %v749 = vrot.slane %v434, 4
        %v750 = vsel %vm511, %v498, %v749
        %v752 = vunpack.c.l.s4 1983009808
        %v753 = vunpack.c.0.s8 %v752
        %v754 = vperm.slane %v748, %v753
        %v756 = vunpack.c.l.s4 1983009808
        %v757 = vunpack.c.0.s8 %v756
        %v758 = vperm.slane %v750, %v757
        %v759 = vrot.slane %v754, 4
        %v760 = vsel %vm511, %v759, %v742
        %v761 = vrot.slane %v742, 4
        %v762 = vsel %vm511, %v754, %v761
        %v764 = vunpack.c.l.s4 1934713408
        %v765 = vunpack.c.0.s8 %v764
        %v766 = vperm.slane %v760, %v765
        %v768 = vunpack.c.l.s4 1934713408
        %v769 = vunpack.c.0.s8 %v768
        %v770 = vperm.slane %v762, %v769
        %v771 = vrot.slane %v758, 4
        %v772 = vsel %vm511, %v771, %v746
        %v773 = vrot.slane %v746, 4
        %v774 = vsel %vm511, %v758, %v773
        %v776 = vunpack.c.l.s4 1934713408
        %v777 = vunpack.c.0.s8 %v776
        %v778 = vperm.slane %v772, %v777
        %v780 = vunpack.c.l.s4 1934713408
        %v781 = vunpack.c.0.s8 %v780
        %v782 = vperm.slane %v774, %v781
        %v783 = vrot.slane %v766, 4
        %v784 = vsel %vm511, 0.0, %v783
        %v785 = vrot.slane %v770, 4
        %v786 = vsel %vm511, 0.0, %v785
        %v787 = vrot.slane %v778, 4
        %v788 = vsel %vm511, 0.0, %v787
        %v789 = vrot.slane %v782, 4
        %v790 = vsel %vm511, 0.0, %v789
        %v791 = vrot.slane %v467, 4
        %v792 = vsel %vm511, %v791, %v403
        %v793 = vrot.slane %v403, 4
        %v794 = vsel %vm511, %v467, %v793
        %v796 = vunpack.c.l.s4 1983009808
        %v797 = vunpack.c.0.s8 %v796
        %v798 = vperm.slane %v792, %v797
        %v800 = vunpack.c.l.s4 1983009808
        %v801 = vunpack.c.0.s8 %v800
        %v802 = vperm.slane %v794, %v801
        %v803 = vrot.slane %v499, 4
        %v804 = vsel %vm511, %v803, %v435
        %v805 = vrot.slane %v435, 4
        %v806 = vsel %vm511, %v499, %v805
        %v808 = vunpack.c.l.s4 1983009808
        %v809 = vunpack.c.0.s8 %v808
        %v810 = vperm.slane %v804, %v809
        %v812 = vunpack.c.l.s4 1983009808
        %v813 = vunpack.c.0.s8 %v812
        %v814 = vperm.slane %v806, %v813
        %v815 = vrot.slane %v810, 4
        %v816 = vsel %vm511, %v815, %v798
        %v817 = vrot.slane %v798, 4
        %v818 = vsel %vm511, %v810, %v817
        %v820 = vunpack.c.l.s4 1934713408
        %v821 = vunpack.c.0.s8 %v820
        %v822 = vperm.slane %v816, %v821
        %v824 = vunpack.c.l.s4 1934713408
        %v825 = vunpack.c.0.s8 %v824
        %v826 = vperm.slane %v818, %v825
        %v827 = vrot.slane %v814, 4
        %v828 = vsel %vm511, %v827, %v802
        %v829 = vrot.slane %v802, 4
        %v830 = vsel %vm511, %v814, %v829
        %v832 = vunpack.c.l.s4 1934713408
        %v833 = vunpack.c.0.s8 %v832
        %v834 = vperm.slane %v828, %v833
        %v836 = vunpack.c.l.s4 1934713408
        %v837 = vunpack.c.0.s8 %v836
        %v838 = vperm.slane %v830, %v837
        %v839 = vrot.slane %v822, 4
        %v840 = vsel %vm511, 0.0, %v839
        %v841 = vrot.slane %v826, 4
        %v842 = vsel %vm511, 0.0, %v841
        %v843 = vrot.slane %v834, 4
        %v844 = vsel %vm511, 0.0, %v843
        %v845 = vrot.slane %v838, 4
        %v846 = vsel %vm511, 0.0, %v845
        %v847 = vrot.slane %v468, 4
        %v848 = vsel %vm511, %v847, %v404
        %v849 = vrot.slane %v404, 4
        %v850 = vsel %vm511, %v468, %v849
        %v852 = vunpack.c.l.s4 1983009808
        %v853 = vunpack.c.0.s8 %v852
        %v854 = vperm.slane %v848, %v853
        %v856 = vunpack.c.l.s4 1983009808
        %v857 = vunpack.c.0.s8 %v856
        %v858 = vperm.slane %v850, %v857
        %v859 = vrot.slane %v500, 4
        %v860 = vsel %vm511, %v859, %v436
        %v861 = vrot.slane %v436, 4
        %v862 = vsel %vm511, %v500, %v861
        %v864 = vunpack.c.l.s4 1983009808
        %v865 = vunpack.c.0.s8 %v864
        %v866 = vperm.slane %v860, %v865
        %v868 = vunpack.c.l.s4 1983009808
        %v869 = vunpack.c.0.s8 %v868
        %v870 = vperm.slane %v862, %v869
        %v871 = vrot.slane %v866, 4
        %v872 = vsel %vm511, %v871, %v854
        %v873 = vrot.slane %v854, 4
        %v874 = vsel %vm511, %v866, %v873
        %v876 = vunpack.c.l.s4 1934713408
        %v877 = vunpack.c.0.s8 %v876
        %v878 = vperm.slane %v872, %v877
        %v880 = vunpack.c.l.s4 1934713408
        %v881 = vunpack.c.0.s8 %v880
        %v882 = vperm.slane %v874, %v881
        %v883 = vrot.slane %v870, 4
        %v884 = vsel %vm511, %v883, %v858
        %v885 = vrot.slane %v858, 4
        %v886 = vsel %vm511, %v870, %v885
        %v888 = vunpack.c.l.s4 1934713408
        %v889 = vunpack.c.0.s8 %v888
        %v890 = vperm.slane %v884, %v889
        %v892 = vunpack.c.l.s4 1934713408
        %v893 = vunpack.c.0.s8 %v892
        %v894 = vperm.slane %v886, %v893
        %v895 = vrot.slane %v878, 4
        %v896 = vsel %vm511, 0.0, %v895
        %v897 = vrot.slane %v882, 4
        %v898 = vsel %vm511, 0.0, %v897
        %v899 = vrot.slane %v890, 4
        %v900 = vsel %vm511, 0.0, %v899
        %v901 = vrot.slane %v894, 4
        %v902 = vsel %vm511, 0.0, %v901
        %v903 = vrot.slane %v469, 4
        %v904 = vsel %vm511, %v903, %v405
        %v905 = vrot.slane %v405, 4
        %v906 = vsel %vm511, %v469, %v905
        %v908 = vunpack.c.l.s4 1983009808
        %v909 = vunpack.c.0.s8 %v908
        %v910 = vperm.slane %v904, %v909
        %v912 = vunpack.c.l.s4 1983009808
        %v913 = vunpack.c.0.s8 %v912
        %v914 = vperm.slane %v906, %v913
        %v915 = vrot.slane %v501, 4
        %v916 = vsel %vm511, %v915, %v437
        %v917 = vrot.slane %v437, 4
        %v918 = vsel %vm511, %v501, %v917
        %v920 = vunpack.c.l.s4 1983009808
        %v921 = vunpack.c.0.s8 %v920
        %v922 = vperm.slane %v916, %v921
        %v924 = vunpack.c.l.s4 1983009808
        %v925 = vunpack.c.0.s8 %v924
        %v926 = vperm.slane %v918, %v925
        %v927 = vrot.slane %v922, 4
        %v928 = vsel %vm511, %v927, %v910
        %v929 = vrot.slane %v910, 4
        %v930 = vsel %vm511, %v922, %v929
        %v932 = vunpack.c.l.s4 1934713408
        %v933 = vunpack.c.0.s8 %v932
        %v934 = vperm.slane %v928, %v933
        %v936 = vunpack.c.l.s4 1934713408
        %v937 = vunpack.c.0.s8 %v936
        %v938 = vperm.slane %v930, %v937
        %v939 = vrot.slane %v926, 4
        %v940 = vsel %vm511, %v939, %v914
        %v941 = vrot.slane %v914, 4
        %v942 = vsel %vm511, %v926, %v941
        %v944 = vunpack.c.l.s4 1934713408
        %v945 = vunpack.c.0.s8 %v944
        %v946 = vperm.slane %v940, %v945
        %v948 = vunpack.c.l.s4 1934713408
        %v949 = vunpack.c.0.s8 %v948
        %v950 = vperm.slane %v942, %v949
        %v951 = vrot.slane %v934, 4
        %v952 = vsel %vm511, 0.0, %v951
        %v953 = vrot.slane %v938, 4
        %v954 = vsel %vm511, 0.0, %v953
        %v955 = vrot.slane %v946, 4
        %v956 = vsel %vm511, 0.0, %v955
        %v957 = vrot.slane %v950, 4
        %v958 = vsel %vm511, 0.0, %v957
        %960 = vrot.lane.b32.xlu0 %v560, 4
        %v961 = vpop.permute.xlu0 %960
        %964 = vrot.lane.b32.xlu0 %v546, 8
        %v965 = vpop.permute.xlu0 %964
        %968 = vrot.lane.b32.xlu0 %v562, 12
        %v969 = vpop.permute.xlu0 %968
        %972 = vrot.lane.b32.xlu0 %v554, 16
        %v973 = vpop.permute.xlu0 %972
        %976 = vrot.lane.b32.xlu0 %v564, 20
        %v977 = vpop.permute.xlu0 %976
        %980 = vrot.lane.b32.xlu0 %v558, 24
        %v981 = vpop.permute.xlu0 %980
        %984 = vrot.lane.b32.xlu0 %v566, 28
        %v985 = vpop.permute.xlu0 %984
        %988 = vrot.lane.b32.xlu0 %v598, 32
        %v989 = vpop.permute.xlu0 %988
        %992 = vrot.lane.b32.xlu0 %v616, 36
        %v993 = vpop.permute.xlu0 %992
        %996 = vrot.lane.b32.xlu0 %v602, 40
        %v997 = vpop.permute.xlu0 %996
        %1000 = vrot.lane.b32.xlu0 %v618, 44
        %v1001 = vpop.permute.xlu0 %1000
        %1004 = vrot.lane.b32.xlu0 %v610, 48
        %v1005 = vpop.permute.xlu0 %1004
        %1008 = vrot.lane.b32.xlu0 %v620, 52
        %v1009 = vpop.permute.xlu0 %1008
        %1012 = vrot.lane.b32.xlu0 %v614, 56
        %v1013 = vpop.permute.xlu0 %1012
        %1016 = vrot.lane.b32.xlu0 %v622, 60
        %v1017 = vpop.permute.xlu0 %1016
        %1020 = vrot.lane.b32.xlu0 %v654, 64
        %v1021 = vpop.permute.xlu0 %1020
        %1024 = vrot.lane.b32.xlu0 %v672, 68
        %v1025 = vpop.permute.xlu0 %1024
        %1028 = vrot.lane.b32.xlu0 %v658, 72
        %v1029 = vpop.permute.xlu0 %1028
        %1032 = vrot.lane.b32.xlu0 %v674, 76
        %v1033 = vpop.permute.xlu0 %1032
        %1036 = vrot.lane.b32.xlu0 %v666, 80
        %v1037 = vpop.permute.xlu0 %1036
        %1040 = vrot.lane.b32.xlu0 %v676, 84
        %v1041 = vpop.permute.xlu0 %1040
        %1044 = vrot.lane.b32.xlu0 %v670, 88
        %v1045 = vpop.permute.xlu0 %1044
        %1048 = vrot.lane.b32.xlu0 %v678, 92
        %v1049 = vpop.permute.xlu0 %1048
        %1052 = vrot.lane.b32.xlu0 %v710, 96
        %v1053 = vpop.permute.xlu0 %1052
        %1056 = vrot.lane.b32.xlu0 %v728, 100
        %v1057 = vpop.permute.xlu0 %1056
        %1060 = vrot.lane.b32.xlu0 %v714, 104
        %v1061 = vpop.permute.xlu0 %1060
        %1064 = vrot.lane.b32.xlu0 %v730, 108
        %v1065 = vpop.permute.xlu0 %1064
        %1068 = vrot.lane.b32.xlu0 %v722, 112
        %v1069 = vpop.permute.xlu0 %1068
        %1072 = vrot.lane.b32.xlu0 %v732, 116
        %v1073 = vpop.permute.xlu0 %1072
        %1076 = vrot.lane.b32.xlu0 %v726, 120
        %v1077 = vpop.permute.xlu0 %1076
        %1080 = vrot.lane.b32.xlu0 %v734, 124
        %v1081 = vpop.permute.xlu0 %1080
        %1084 = vrot.lane.b32.xlu0 %v784, 4
        %v1085 = vpop.permute.xlu0 %1084
        %1088 = vrot.lane.b32.xlu0 %v770, 8
        %v1089 = vpop.permute.xlu0 %1088
        %1092 = vrot.lane.b32.xlu0 %v786, 12
        %v1093 = vpop.permute.xlu0 %1092
        %1096 = vrot.lane.b32.xlu0 %v778, 16
        %v1097 = vpop.permute.xlu0 %1096
        %1100 = vrot.lane.b32.xlu0 %v788, 20
        %v1101 = vpop.permute.xlu0 %1100
        %1104 = vrot.lane.b32.xlu0 %v782, 24
        %v1105 = vpop.permute.xlu0 %1104
        %1108 = vrot.lane.b32.xlu0 %v790, 28
        %v1109 = vpop.permute.xlu0 %1108
        %1112 = vrot.lane.b32.xlu0 %v822, 32
        %v1113 = vpop.permute.xlu0 %1112
        %1116 = vrot.lane.b32.xlu0 %v840, 36
        %v1117 = vpop.permute.xlu0 %1116
        %1120 = vrot.lane.b32.xlu0 %v826, 40
        %v1121 = vpop.permute.xlu0 %1120
        %1124 = vrot.lane.b32.xlu0 %v842, 44
        %v1125 = vpop.permute.xlu0 %1124
        %1128 = vrot.lane.b32.xlu0 %v834, 48
        %v1129 = vpop.permute.xlu0 %1128
        %1132 = vrot.lane.b32.xlu0 %v844, 52
        %v1133 = vpop.permute.xlu0 %1132
        %1136 = vrot.lane.b32.xlu0 %v838, 56
        %v1137 = vpop.permute.xlu0 %1136
        %1140 = vrot.lane.b32.xlu0 %v846, 60
        %v1141 = vpop.permute.xlu0 %1140
        %1144 = vrot.lane.b32.xlu0 %v878, 64
        %v1145 = vpop.permute.xlu0 %1144
        %1148 = vrot.lane.b32.xlu0 %v896, 68
        %v1149 = vpop.permute.xlu0 %1148
        %1152 = vrot.lane.b32.xlu0 %v882, 72
        %v1153 = vpop.permute.xlu0 %1152
        %1156 = vrot.lane.b32.xlu0 %v898, 76
        %v1157 = vpop.permute.xlu0 %1156
        %1160 = vrot.lane.b32.xlu0 %v890, 80
        %v1161 = vpop.permute.xlu0 %1160
        %1164 = vrot.lane.b32.xlu0 %v900, 84
        %v1165 = vpop.permute.xlu0 %1164
        %1168 = vrot.lane.b32.xlu0 %v894, 88
        %v1169 = vpop.permute.xlu0 %1168
        %1172 = vrot.lane.b32.xlu0 %v902, 92
        %v1173 = vpop.permute.xlu0 %1172
        %1176 = vrot.lane.b32.xlu0 %v934, 96
        %v1177 = vpop.permute.xlu0 %1176
        %1180 = vrot.lane.b32.xlu0 %v952, 100
        %v1181 = vpop.permute.xlu0 %1180
        %1184 = vrot.lane.b32.xlu0 %v938, 104
        %v1185 = vpop.permute.xlu0 %1184
        %1188 = vrot.lane.b32.xlu0 %v954, 108
        %v1189 = vpop.permute.xlu0 %1188
        %1192 = vrot.lane.b32.xlu0 %v946, 112
        %v1193 = vpop.permute.xlu0 %1192
        %1196 = vrot.lane.b32.xlu0 %v956, 116
        %v1197 = vpop.permute.xlu0 %1196
        %1200 = vrot.lane.b32.xlu0 %v950, 120
        %v1201 = vpop.permute.xlu0 %1200
        %1204 = vrot.lane.b32.xlu0 %v958, 124
        %v1205 = vpop.permute.xlu0 %1204
        %vm1207 = vcmask 31744
        %v1208 = vsel %vm1207, %v542, %v961
        %vm1209 = vcmask 64512
        %v1210 = vsel %vm1209, %v1208, %v965
        %vm1211 = vcmask 97280
        %v1212 = vsel %vm1211, %v1210, %v969
        %vm1213 = vcmask 130048
        %v1214 = vsel %vm1213, %v1212, %v973
        %vm1215 = vcmask 162816
        %v1216 = vsel %vm1215, %v1214, %v977
        %vm1217 = vcmask 195584
        %v1218 = vsel %vm1217, %v1216, %v981
        %vm1219 = vcmask 228352
        %v1220 = vsel %vm1219, %v1218, %v985
        %vm1221 = vcmask 261120
        %v1222 = vsel %vm1221, %v1220, %v989
        %vm1223 = vcmask 293888
        %v1224 = vsel %vm1223, %v1222, %v993
        %vm1225 = vcmask 326656
        %v1226 = vsel %vm1225, %v1224, %v997
        %vm1227 = vcmask 359424
        %v1228 = vsel %vm1227, %v1226, %v1001
        %vm1229 = vcmask 392192
        %v1230 = vsel %vm1229, %v1228, %v1005
        %vm1231 = vcmask 424960
        %v1232 = vsel %vm1231, %v1230, %v1009
        %vm1233 = vcmask 457728
        %v1234 = vsel %vm1233, %v1232, %v1013
        %vm1235 = vcmask 490496
        %v1236 = vsel %vm1235, %v1234, %v1017
        %vm1237 = vcmask 523264
        %v1238 = vsel %vm1237, %v1236, %v1021
        %vm1239 = vcmask 556032
        %v1240 = vsel %vm1239, %v1238, %v1025
        %vm1241 = vcmask 588800
        %v1242 = vsel %vm1241, %v1240, %v1029
        %vm1243 = vcmask 621568
        %v1244 = vsel %vm1243, %v1242, %v1033
        %vm1245 = vcmask 654336
        %v1246 = vsel %vm1245, %v1244, %v1037
        %vm1247 = vcmask 687104
        %v1248 = vsel %vm1247, %v1246, %v1041
        %vm1249 = vcmask 719872
        %v1250 = vsel %vm1249, %v1248, %v1045
        %vm1251 = vcmask 752640
        %v1252 = vsel %vm1251, %v1250, %v1049
        %vm1253 = vcmask 785408
        %v1254 = vsel %vm1253, %v1252, %v1053
        %vm1255 = vcmask 818176
        %v1256 = vsel %vm1255, %v1254, %v1057
        %vm1257 = vcmask 850944
        %v1258 = vsel %vm1257, %v1256, %v1061
        %vm1259 = vcmask 883712
        %v1260 = vsel %vm1259, %v1258, %v1065
        %vm1261 = vcmask 916480
        %v1262 = vsel %vm1261, %v1260, %v1069
        %vm1263 = vcmask 949248
        %v1264 = vsel %vm1263, %v1262, %v1073
        %vm1265 = vcmask 982016
        %v1266 = vsel %vm1265, %v1264, %v1077
        %vm1267 = vcmask 1014784
        %v1268 = vsel %vm1267, %v1266, %v1081
        %v1269 = vsel %vm1207, %v766, %v1085
        %v1270 = vsel %vm1209, %v1269, %v1089
        %v1271 = vsel %vm1211, %v1270, %v1093
        %v1272 = vsel %vm1213, %v1271, %v1097
        %v1273 = vsel %vm1215, %v1272, %v1101
        %v1274 = vsel %vm1217, %v1273, %v1105
        %v1275 = vsel %vm1219, %v1274, %v1109
        %v1276 = vsel %vm1221, %v1275, %v1113
        %v1277 = vsel %vm1223, %v1276, %v1117
        %v1278 = vsel %vm1225, %v1277, %v1121
        %v1279 = vsel %vm1227, %v1278, %v1125
        %v1280 = vsel %vm1229, %v1279, %v1129
        %v1281 = vsel %vm1231, %v1280, %v1133
        %v1282 = vsel %vm1233, %v1281, %v1137
        %v1283 = vsel %vm1235, %v1282, %v1141
        %v1284 = vsel %vm1237, %v1283, %v1145
        %v1285 = vsel %vm1239, %v1284, %v1149
        %v1286 = vsel %vm1241, %v1285, %v1153
        %v1287 = vsel %vm1243, %v1286, %v1157
        %v1288 = vsel %vm1245, %v1287, %v1161
        %v1289 = vsel %vm1247, %v1288, %v1165
        %v1290 = vsel %vm1249, %v1289, %v1169
        %v1291 = vsel %vm1251, %v1290, %v1173
        %v1292 = vsel %vm1253, %v1291, %v1177
        %v1293 = vsel %vm1255, %v1292, %v1181
        %v1294 = vsel %vm1257, %v1293, %v1185
        %v1295 = vsel %vm1259, %v1294, %v1189
        %v1296 = vsel %vm1261, %v1295, %v1193
        %v1297 = vsel %vm1263, %v1296, %v1197
        %v1298 = vsel %vm1265, %v1297, %v1201
        %v1299 = vsel %vm1267, %v1298, %v1205
        %v1302 = vrot.slane %v1299, 4
        %vm1303 = vcmask 1043456
        %v1304 = vsel %vm1303, %v1268, %v1302
        %1306 = vst [vmem:[%s191] sm:$0xff] %v1304
        %s1307 = sand.u32 %s79, 1
        %s1308 = scalar_lea.sflag [#allocation4], %s1307
        %s1309 = sand.u32 %s79, 1
        %s1310 = smul.addr %s1309, 8
        %s1311 = scalar_lea.vmem [#allocation5], %s1310
        // Predicated region
        $region29: #{tpu_custom_call.1} parent=23 // pred_check
          %p1312 = pneg %p89
        $region30: #{tpu_custom_call.1} parent=23 // pred_check_branch
          %1314 = sbr.rel (%p1312) target = $region32
        $region31: #{tpu_custom_call.1} parent=23 // pred_region
          %1316 = vsyncadd %s1308, 0
          %s1317 = smul.addr %s25, 2
          %s1318 = smul.addr %s24, 2
          %s1319 = sadd.s32 %s1317, %s1318
          %s1320 = smul.addr %s23, 4
          %s1321 = sadd.s32 %s1319, %s1320
          %s1322 = smul.addr %s1321, 4
          %s1323 = scalar_lea.hbm %s1, %s1322
          %s1325 = sshll.u32 %s1311, 4
          %s1326 = int_to_ptr.vmem [resolvable:$true] %s1325
          %s1327 = sshll.u32 %s1323, 4
          %s1328 = int_to_ptr.hbm [resolvable:$true] %s1327
          %1330 = dma.vmem_to_hbm [thread:$0]  %s1326, 128, %s1328, %s1308
        $region32: #{tpu_custom_call.1} parent=23 // pred_fallthru
          _
      $region24: #{tpu_custom_call.1} parent=5 // pred_fallthru
        _
      %p1331 = scmp.le.s32.totalorder 2, %s13
      // Predicated region
      $region33: #{tpu_custom_call.1} parent=5 // pred_check
        %p1332 = pneg %p1331
      $region34: #{tpu_custom_call.1} parent=5 // pred_check_branch
        %1334 = sbr.rel (%p1332) target = $region36
      $region35: #{tpu_custom_call.1} parent=5 // pred_region
        %s1335 = ssub.s32 %s13, 2
        // Predicated region
        $region37: #{tpu_custom_call.1} parent=35 // pred_check
          %p1336 = pneg %p95
        $region38: #{tpu_custom_call.1} parent=35 // pred_check_branch
          %1338 = sbr.rel (%p1336) target = $region40
        $region39: #{tpu_custom_call.1} parent=35 // pred_region
          %s1339 = sand.u32 %s80, 1
          %s1340 = scalar_lea.sflag [#allocation4], %s1339
          %s1341 = sand.u32 %s80, 1
          %s1342 = smul.addr %s1341, 8
          %s1343 = scalar_lea.vmem [#allocation5], %s1342
          %1345 = dma.done %s1340, 128
        $region40: #{tpu_custom_call.1} parent=35 // pred_fallthru
          _
      $region36: #{tpu_custom_call.1} parent=5 // pred_fallthru
        _
    $region6: #{tpu_custom_call.1} parent=1 // loop_footer
      %s17 = sadd.s32 1, %s13
    $region7: #{tpu_custom_call.1} parent=1 // loop_footer_branch
      %12 = sbr.rel target = $region3
    $region8: #{tpu_custom_call.1} parent=1 // loop_exit
      _
    %1346 = vsyncpa [#allocation3], 1
    %s1347 = scalar_lea.sflag [#allocation3], 1
    %1348 = vsyncpa %s1347, 1
    %1349 = vsyncpa [#allocation4], 1
    %s1350 = scalar_lea.sflag [#allocation4], 1
    %1351 = vsyncpa %s1350, 1

// kernel: tpu_custom_call.1
$region0: #{tpu_custom_call.1}
  #allocation0 [shape = 'u32[]', space=smem, size = 0x4, offset = 0x4, fixed_abs, tag = 'smem constant byte address 0x4 - core index']
  #allocation1 [shape = 'u32[72,128]{1,0:T(1,128)}', space=vmem, size = 0x9000, scoped, tag = 'internal scratch']
  #allocation6 [shape = 's32[]', space=sflag, size = 0x4, offset = 0, fixed_abs, tag = 'sflag constant byte address 0x0 - dummy sync flag']
  %s0 = inlined_call_operand.hbm [shape: f32[2,4,8,2,4,8], index: 0, kind: input, shape index: {}]
  %s1 = inlined_call_operand.hbm [shape: f32[2,2,2,2,256], index: 1, kind: output, shape index: {}]
  %s2 = sld [smem:[#allocation0]]
  $region41: #{tpu_custom_call.1} parent=0
    _
  %s4 = ssub.s32 1, %s2
  %s5 = scalar_select 0, %s4, %s2
  $region1: #{tpu_custom_call.1} parent=0
    #allocation2 [shape = 'u8[65536]{0}', space=vmem, size = 0x10000, scoped, tag = 'input window, operand 0']
    #allocation3 [shape = 's32[2]{0}', space=sflag, size = 0x8, scoped, tag = 'scoped memory for tpu_custom_call.1']
    #allocation4 [shape = 's32[2]{0}', space=sflag, size = 0x8, scoped, tag = 'scoped memory for tpu_custom_call.1']
    #allocation5 [shape = 'u8[4096]{0}', space=vmem, size = 0x1000, scoped, tag = 'output window, operand 0']
    %6 = vsyncpa [#allocation3], 0
    %s7 = scalar_lea.sflag [#allocation3], 1
    %8 = vsyncpa %s7, 0
    %9 = vsyncpa [#allocation4], 0
    %s10 = scalar_lea.sflag [#allocation4], 1
    %11 = vsyncpa %s10, 0
    loop: start=0, step=1, limit=10
    $region2: #{tpu_custom_call.1} parent=1 // loop_pre_header
      _
    $region3: #{tpu_custom_call.1} parent=1 // loop_header
      %s13 = sphi 0, %s17
      %p14 = scmp.ge.s32.totalorder %s13, 10
      %s20 = sphi 0, %s39
      %s21 = sphi 0, %s35
      %s22 = sphi 0, %s31
      %s23 = sphi 0, %s20
      %s24 = sphi 0, %s21
      %s25 = sphi 0, %s22
      %s26 = sphi 0, %s23
      %s27 = sphi 0, %s24
      %s28 = sphi 0, %s25
      %s46 = sphi 0, %s48
      %s49 = sphi 0, %s46
      %s50 = sphi 0, %s49
      %s66 = sphi 0, %s50
      %s76 = sphi 0, %s78
      %s79 = sphi 0, %s76
      %s80 = sphi 0, %s79
      %s96 = sphi 0, %s80
    $region4: #{tpu_custom_call.1} parent=1 // loop_header_branch
      %16 = sbr.rel (%p14) target = $region8
    $region5: #{tpu_custom_call.1} parent=1 // loop_body
      %s18 = ssub.s32 %s13, 1
      %s19 = ssub.s32 %s13, 2
      %s29 = sadd.s32 1, %s22
      %p30 = scmp.ge.s32.totalorder %s29, 2
      %s31 = scalar_select %p30, 0, %s29
      %s32 = sadd.s32 1, %s21
      %s33 = scalar_select %p30, %s32, %s21
      %p34 = scmp.ge.s32.totalorder %s33, 2
      %s35 = scalar_select %p34, 0, %s33
      %s36 = sadd.s32 1, %s20
      %s37 = scalar_select %p34, %s36, %s20
      %p38 = scmp.ge.s32.totalorder %s37, 2
      %s39 = scalar_select %p38, 0, %s37
      %s40 = ssub.s32 %s20, %s39
      %s41 = ssub.s32 %s21, %s35
      %s42 = sor.u32 %s40, %s41
      %s43 = ssub.s32 %s22, %s31
      %s44 = sor.u32 %s42, %s43
      %p45 = scmp.eq.s32.totalorder %s44, 0
      %s47 = sadd.s32 %s46, 1
      %s48 = scalar_select %p45, %s46, %s47
      %p51 = pneg %p45
      %p52 = scmp.eq.s32.totalorder %s13, 7
      %p53 = por %p51, %p52
      %p54 = scmp.ne.s32.totalorder %s46, %s49
      %p55 = scmp.eq.s32.totalorder %s13, 0
      %p56 = por %p54, %p55
      %p57 = scmp.ne.s32.totalorder %s46, %s49
      %p58 = scmp.eq.s32.totalorder %s18, 7
      %p59 = por %p57, %p58
      %p60 = scmp.ne.s32.totalorder %s49, %s50
      %p61 = scmp.eq.s32.totalorder %s18, 0
      %p62 = por %p60, %p61
      %p63 = scmp.ne.s32.totalorder %s49, %s50
      %p64 = scmp.eq.s32.totalorder %s19, 7
      %p65 = por %p63, %p64
      %p67 = scmp.ne.s32.totalorder %s50, %s66
      %p68 = scmp.eq.s32.totalorder %s19, 0
      %p69 = por %p67, %p68
      %s70 = ssub.s32 %s20, %s39
      %s71 = ssub.s32 %s21, %s35
      %s72 = sor.u32 %s70, %s71
      %s73 = ssub.s32 %s22, %s31
      %s74 = sor.u32 %s72, %s73
      %p75 = scmp.eq.s32.totalorder %s74, 0
      %s77 = sadd.s32 %s76, 1
      %s78 = scalar_select %p75, %s76, %s77
      %p81 = pneg %p75
      %p82 = scmp.eq.s32.totalorder %s13, 7
      %p83 = por %p81, %p82
      %p84 = scmp.ne.s32.totalorder %s76, %s79
      %p85 = scmp.eq.s32.totalorder %s13, 0
      %p86 = por %p84, %p85
      %p87 = scmp.ne.s32.totalorder %s76, %s79
      %p88 = scmp.eq.s32.totalorder %s18, 7
      %p89 = por %p87, %p88
      %p90 = scmp.ne.s32.totalorder %s79, %s80
      %p91 = scmp.eq.s32.totalorder %s18, 0
      %p92 = por %p90, %p91
      %p93 = scmp.ne.s32.totalorder %s79, %s80
      %p94 = scmp.eq.s32.totalorder %s19, 7
      %p95 = por %p93, %p94
      %p97 = scmp.ne.s32.totalorder %s80, %s96
      %p98 = scmp.eq.s32.totalorder %s19, 0
      %p99 = por %p97, %p98
      %p100 = scmp.le.s32.totalorder 1, %s13
      %p101 = scmp.lt.s32.totalorder %s13, 9
      %p102 = pnand %p100, %p101
      %p103 = pneg %p102
      // Predicated region
      $region9: #{tpu_custom_call.1} parent=5 // pred_check
        _
      $region10: #{tpu_custom_call.1} parent=5 // pred_check_branch
        %105 = sbr.rel (%p102) target = $region12
      $region11: #{tpu_custom_call.1} parent=5 // pred_region
        %s106 = ssub.s32 %s13, 1
      $region12: #{tpu_custom_call.1} parent=5 // pred_fallthru
        _
      %p107 = scmp.lt.s32.totalorder %s13, 8
      // Predicated region
      $region13: #{tpu_custom_call.1} parent=5 // pred_check
        %p108 = pneg %p107
      $region14: #{tpu_custom_call.1} parent=5 // pred_check_branch
        %110 = sbr.rel (%p108) target = $region16
      $region15: #{tpu_custom_call.1} parent=5 // pred_region
        // Predicated region
        $region17: #{tpu_custom_call.1} parent=15 // pred_check
          %p111 = pneg %p56
        $region18: #{tpu_custom_call.1} parent=15 // pred_check_branch
          %113 = sbr.rel (%p111) target = $region20
        $region19: #{tpu_custom_call.1} parent=15 // pred_region
          #allocation7 [shape = 'u32[6]{0}', space=smem, size = 0x18, scoped, tag = 'DMA stride descriptor']
          %s114 = sand.u32 %s46, 1
          %s115 = scalar_lea.sflag [#allocation3], %s114
          %s116 = sand.u32 %s46, 1
          %s117 = smul.addr %s116, 64
          %s118 = scalar_lea.vmem [#allocation2], %s117
          %s119 = smul.u32 4, %s21
          %121 = vsyncadd %s115, 0
          %s122 = smul.addr %s119, 2
          %s123 = sadd.s32 %s22, %s122
          %s124 = smul.addr %s20, 64
          %s125 = sadd.s32 %s123, %s124
          %s126 = smul.addr %s125, 4
          %s127 = scalar_lea.hbm %s0, %s126
          %s129 = sshll.u32 1, 14
          %s130 = sxor.u32 4294967295, %s129
          %s132 = sld [smem:[#allocation0]]
          %s133 = sadd.s32 2, %s132
          %s135 = sshll.u32 7, 26
          %s136 = sxor.u32 4294967295, %s135
          %s137 = sand.u32 0, %s136
          %s138 = sshll.u32 %s133, 26
          %s139 = sor.u32 %s137, %s138
          %s140 = sshll.u32 %s127, 4
          %s141 = int_to_ptr.hbm [resolvable:$true] %s140
          %s142 = sshll.u32 %s118, 4
          %s143 = int_to_ptr.vmem [resolvable:$true] %s142
          %149 = sst [smem:[#allocation7]] 1024
          %s150 = scalar_lea.smem [#allocation7], 1
          %151 = sst [smem:[%s150]] 256
          %s152 = scalar_lea.smem [#allocation7], 2
          %153 = sst [smem:[%s152]] 4
          %s154 = scalar_lea.smem [#allocation7], 3
          %155 = sst [smem:[%s154]] 128
          %s156 = scalar_lea.smem [#allocation7], 4
          %157 = sst [smem:[%s156]] 64
          %s158 = scalar_lea.smem [#allocation7], 5
          %159 = sst [smem:[%s158]] 4
          %161 = dma.general %s141, 1024, %s143, %s115, [#allocation6], [#allocation7], %s139, 0
        $region20: #{tpu_custom_call.1} parent=15 // pred_fallthru
          _
      $region16: #{tpu_custom_call.1} parent=5 // pred_fallthru
        _
      %p162 = scmp.le.s32.totalorder 1, %s13
      %p163 = scmp.lt.s32.totalorder %s13, 9
      %p164 = pnand %p162, %p163
      %p165 = pneg %p164
      // Predicated region
      $region21: #{tpu_custom_call.1} parent=5 // pred_check
        _
      $region22: #{tpu_custom_call.1} parent=5 // pred_check_branch
        %167 = sbr.rel (%p164) target = $region24
      $region23: #{tpu_custom_call.1} parent=5 // pred_region
        %s168 = ssub.s32 %s13, 1
        %s169 = sand.u32 %s49, 1
        %s170 = scalar_lea.sflag [#allocation3], %s169
        %s171 = sand.u32 %s49, 1
        %s172 = smul.addr %s171, 64
        %s173 = scalar_lea.vmem [#allocation2], %s172
        // Predicated region
        $region25: #{tpu_custom_call.1} parent=23 // pred_check
          %p174 = pneg %p62
        $region26: #{tpu_custom_call.1} parent=23 // pred_check_branch
          %176 = sbr.rel (%p174) target = $region28
        $region27: #{tpu_custom_call.1} parent=23 // pred_region
          %178 = dma.done %s170, 1024
        $region28: #{tpu_custom_call.1} parent=23 // pred_fallthru
          _
        %s179 = sand.u32 %s49, 1
        %s180 = scalar_lea.sflag [#allocation3], %s179
        %s181 = sand.u32 %s49, 1
        %s182 = smul.addr %s181, 64
        %s183 = scalar_lea.vmem [#allocation2], %s182
        %p184 = pneg %p62
        %p185 = pneg %p59
        %p186 = pneg %p92
        %p187 = pneg %p89
        %s188 = sand.u32 %s79, 1
        %s189 = scalar_lea.sflag [#allocation4], %s188
        %s190 = sand.u32 %s79, 1
        %s191 = smul.addr %s190, 4
        %s192 = scalar_lea.vmem [#allocation5], %s191
        %s193 = smul.u32 4, %s24
        %v194 = vld [vmem:[%s173] sm:$0xf]
        %v195 = vld [vmem:[%s173 + $0x4] sm:$0xf]
        %v196 = vld [vmem:[%s173 + $0x8] sm:$0xf]
        %v197 = vld [vmem:[%s173 + $0xc] sm:$0xf]
        %v198 = vld [vmem:[%s173 + $0x10] sm:$0xf]
        %v199 = vld [vmem:[%s173 + $0x14] sm:$0xf]
        %v200 = vld [vmem:[%s173 + $0x18] sm:$0xf]
        %v201 = vld [vmem:[%s173 + $0x1c] sm:$0xf]
        %v202 = vld [vmem:[%s173 + $0x20] sm:$0xf]
        %v203 = vld [vmem:[%s173 + $0x24] sm:$0xf]
        %v204 = vld [vmem:[%s173 + $0x28] sm:$0xf]
        %v205 = vld [vmem:[%s173 + $0x2c] sm:$0xf]
        %v206 = vld [vmem:[%s173 + $0x30] sm:$0xf]
        %v207 = vld [vmem:[%s173 + $0x34] sm:$0xf]
        %v208 = vld [vmem:[%s173 + $0x38] sm:$0xf]
        %v209 = vld [vmem:[%s173 + $0x3c] sm:$0xf]
        %226 = vst [vmem:[#allocation1] ss:$2 sm:$0xff] %v194
        %s227 = scalar_lea.vmem [#allocation1], 1
        %228 = vst [vmem:[%s227] ss:$2 sm:$0xff] %v195
        %s229 = scalar_lea.vmem [#allocation1], 16
        %230 = vst [vmem:[%s229] ss:$2 sm:$0xff] %v196
        %s231 = scalar_lea.vmem [#allocation1], 17
        %232 = vst [vmem:[%s231] ss:$2 sm:$0xff] %v197
        %s233 = scalar_lea.vmem [#allocation1], 32
        %234 = vst [vmem:[%s233] ss:$2 sm:$0xff] %v198
        %s235 = scalar_lea.vmem [#allocation1], 33
        %236 = vst [vmem:[%s235] ss:$2 sm:$0xff] %v199
        %s237 = scalar_lea.vmem [#allocation1], 48
        %238 = vst [vmem:[%s237] ss:$2 sm:$0xff] %v200
        %s239 = scalar_lea.vmem [#allocation1], 49
        %240 = vst [vmem:[%s239] ss:$2 sm:$0xff] %v201
        %v241 = vld.sshfl [vmem:[#allocation1] sm:$0xff pattern:$0x75316420]
        %v242 = vld.sshfl [vmem:[#allocation1 + $0x10] sm:$0xff pattern:$0x75316420]
        %v243 = vld.sshfl [vmem:[#allocation1 + $0x20] sm:$0xff pattern:$0x75316420]
        %v244 = vld.sshfl [vmem:[#allocation1 + $0x30] sm:$0xff pattern:$0x75316420]
        %245 = vst [vmem:[#allocation1] ss:$2 sm:$0xff] %v202
        %246 = vst [vmem:[%s227] ss:$2 sm:$0xff] %v203
        %247 = vst [vmem:[%s229] ss:$2 sm:$0xff] %v204
        %248 = vst [vmem:[%s231] ss:$2 sm:$0xff] %v205
        %249 = vst [vmem:[%s233] ss:$2 sm:$0xff] %v206
        %250 = vst [vmem:[%s235] ss:$2 sm:$0xff] %v207
        %251 = vst [vmem:[%s237] ss:$2 sm:$0xff] %v208
        %252 = vst [vmem:[%s239] ss:$2 sm:$0xff] %v209
        %v253 = vld.sshfl [vmem:[#allocation1] sm:$0xff pattern:$0x75316420]
        %v254 = vld.sshfl [vmem:[#allocation1 + $0x10] sm:$0xff pattern:$0x75316420]
        %v255 = vld.sshfl [vmem:[#allocation1 + $0x20] sm:$0xff pattern:$0x75316420]
        %v256 = vld.sshfl [vmem:[#allocation1 + $0x30] sm:$0xff pattern:$0x75316420]
        %265 = vxpose.xlu0.b32.start [1/16] %v241, 128
        %266 = vxpose.xlu0.b32.cont [2/16] %v242, 128
        %267 = vxpose.xlu0.b32.cont [3/16] %v243, 128
        %268 = vxpose.xlu0.b32.cont [4/16] %v244, 128
        %269 = vxpose.xlu0.b32.cont [5/16] %v253, 128
        %270 = vxpose.xlu0.b32.cont [6/16] %v254, 128
        %271 = vxpose.xlu0.b32.cont [7/16] %v255, 128
        %272 = vxpose.xlu0.b32.cont [8/16] %v256, 128
        %273 = vxpose.xlu0.b32.cont [9/16] 0.0, 128
        %274 = vxpose.xlu0.b32.cont [10/16] 0.0, 128
        %275 = vxpose.xlu0.b32.cont [11/16] 0.0, 128
        %276 = vxpose.xlu0.b32.cont [12/16] 0.0, 128
        %277 = vxpose.xlu0.b32.cont [13/16] 0.0, 128
        %278 = vxpose.xlu0.b32.cont [14/16] 0.0, 128
        %279 = vxpose.xlu0.b32.cont [15/16] 0.0, 128
        %280 = vxpose.xlu0.b32.end [16/16] 0.0, 128
        %v281 = vpop.trf.xlu0
        %v282 = vpop.trf.xlu0
        %v283 = vpop.trf.xlu0
        %v284 = vpop.trf.xlu0
        %v285 = vpop.trf.xlu0
        %v286 = vpop.trf.xlu0
        %v287 = vpop.trf.xlu0
        %v288 = vpop.trf.xlu0
        %v289 = vpop.trf.xlu0
        %v290 = vpop.trf.xlu0
        %v291 = vpop.trf.xlu0
        %v292 = vpop.trf.xlu0
        %v293 = vpop.trf.xlu0
        %v294 = vpop.trf.xlu0
        %v295 = vpop.trf.xlu0
        %v296 = vpop.trf.xlu0
        %v298 = vrot.slane %v281, 4
        %300 = vxpose.xlu0.b32.start [1/16] %v281, 128
        %301 = vxpose.xlu0.b32.cont [2/16] 0.0, 128
        %302 = vxpose.xlu0.b32.cont [3/16] 0.0, 128
        %303 = vxpose.xlu0.b32.cont [4/16] 0.0, 128
        %304 = vxpose.xlu0.b32.cont [5/16] 0.0, 128
        %305 = vxpose.xlu0.b32.cont [6/16] 0.0, 128
        %306 = vxpose.xlu0.b32.cont [7/16] 0.0, 128
        %307 = vxpose.xlu0.b32.cont [8/16] 0.0, 128
        %308 = vxpose.xlu0.b32.cont [9/16] 0.0, 128
        %309 = vxpose.xlu0.b32.cont [10/16] 0.0, 128
        %310 = vxpose.xlu0.b32.cont [11/16] 0.0, 128
        %311 = vxpose.xlu0.b32.cont [12/16] 0.0, 128
        %312 = vxpose.xlu0.b32.cont [13/16] 0.0, 128
        %313 = vxpose.xlu0.b32.cont [14/16] 0.0, 128
        %314 = vxpose.xlu0.b32.cont [15/16] 0.0, 128
        %315 = vxpose.xlu0.b32.end [16/16] 0.0, 128
        %v316 = vpop.trf.xlu0
        %v317 = vpop.trf.xlu0
        %v318 = vpop.trf.xlu0
        %v319 = vpop.trf.xlu0
        %v320 = vpop.trf.xlu0
        %v321 = vpop.trf.xlu0
        %v322 = vpop.trf.xlu0
        %v323 = vpop.trf.xlu0
        %v324 = vpop.trf.xlu0
        %v325 = vpop.trf.xlu0
        %v326 = vpop.trf.xlu0
        %v327 = vpop.trf.xlu0
        %v328 = vpop.trf.xlu0
        %v329 = vpop.trf.xlu0
        %v330 = vpop.trf.xlu0
        %v331 = vpop.trf.xlu0
        %332 = vxpose.xlu0.b32.start [1/16] %v298, 128
        %333 = vxpose.xlu0.b32.cont [2/16] 0.0, 128
        %334 = vxpose.xlu0.b32.cont [3/16] 0.0, 128
        %335 = vxpose.xlu0.b32.cont [4/16] 0.0, 128
        %336 = vxpose.xlu0.b32.cont [5/16] 0.0, 128
        %337 = vxpose.xlu0.b32.cont [6/16] 0.0, 128
        %338 = vxpose.xlu0.b32.cont [7/16] 0.0, 128
        %339 = vxpose.xlu0.b32.cont [8/16] 0.0, 128
        %340 = vxpose.xlu0.b32.cont [9/16] 0.0, 128
        %341 = vxpose.xlu0.b32.cont [10/16] 0.0, 128
        %342 = vxpose.xlu0.b32.cont [11/16] 0.0, 128
        %343 = vxpose.xlu0.b32.cont [12/16] 0.0, 128
        %344 = vxpose.xlu0.b32.cont [13/16] 0.0, 128
        %345 = vxpose.xlu0.b32.cont [14/16] 0.0, 128
        %346 = vxpose.xlu0.b32.cont [15/16] 0.0, 128
        %347 = vxpose.xlu0.b32.end [16/16] 0.0, 128
        %v348 = vpop.trf.xlu0
        %v349 = vpop.trf.xlu0
        %v350 = vpop.trf.xlu0
        %v351 = vpop.trf.xlu0
        %v352 = vpop.trf.xlu0
        %v353 = vpop.trf.xlu0
        %v354 = vpop.trf.xlu0
        %v355 = vpop.trf.xlu0
        %v356 = vpop.trf.xlu0
        %v357 = vpop.trf.xlu0
        %v358 = vpop.trf.xlu0
        %v359 = vpop.trf.xlu0
        %v360 = vpop.trf.xlu0
        %v361 = vpop.trf.xlu0
        %v362 = vpop.trf.xlu0
        %v363 = vpop.trf.xlu0
        %v364 = vrot.slane %v316, 4
        %vm365 = vcmask 1047556
        %v366 = vsel %vm365, 0.0, %v364
        %v368 = vunpack.c.l.s4 1983009808
        %v369 = vunpack.c.0.s8 %v368
        %v370 = vperm.slane %v316, %v369
        %v372 = vunpack.c.l.s4 1983009808
        %v373 = vunpack.c.0.s8 %v372
        %v374 = vperm.slane %v366, %v373
        %v375 = vrot.slane %v348, 4
        %v376 = vsel %vm365, 0.0, %v375
        %v378 = vunpack.c.l.s4 1983009808
        %v379 = vunpack.c.0.s8 %v378
        %v380 = vperm.slane %v348, %v379
        %v382 = vunpack.c.l.s4 1983009808
        %v383 = vunpack.c.0.s8 %v382
        %v384 = vperm.slane %v376, %v383
        %v385 = vrot.slane %v380, 4
        %v386 = vsel %vm365, %v385, %v370
        %v387 = vrot.slane %v370, 4
        %v388 = vsel %vm365, %v380, %v387
        %v390 = vunpack.c.l.s4 1934713408
        %v391 = vunpack.c.0.s8 %v390
        %v392 = vperm.slane %v386, %v391
        %v394 = vunpack.c.l.s4 1934713408
        %v395 = vunpack.c.0.s8 %v394
        %v396 = vperm.slane %v388, %v395
        %v397 = vrot.slane %v384, 4
        %v398 = vsel %vm365, %v397, %v374
        %v399 = vrot.slane %v374, 4
        %v400 = vsel %vm365, %v384, %v399
        %v402 = vunpack.c.l.s4 1934713408
        %v403 = vunpack.c.0.s8 %v402
        %v404 = vperm.slane %v398, %v403
        %v406 = vunpack.c.l.s4 1934713408
        %v407 = vunpack.c.0.s8 %v406
        %v408 = vperm.slane %v400, %v407
        %v409 = vrot.slane %v392, 4
        %v410 = vsel %vm365, 0.0, %v409
        %v411 = vrot.slane %v396, 4
        %v412 = vsel %vm365, 0.0, %v411
        %v413 = vrot.slane %v404, 4
        %v414 = vsel %vm365, 0.0, %v413
        %v415 = vrot.slane %v408, 4
        %v416 = vsel %vm365, 0.0, %v415
        %v417 = vrot.slane %v317, 4
        %v418 = vsel %vm365, 0.0, %v417
        %v420 = vunpack.c.l.s4 1983009808
        %v421 = vunpack.c.0.s8 %v420
        %v422 = vperm.slane %v317, %v421
        %v424 = vunpack.c.l.s4 1983009808
        %v425 = vunpack.c.0.s8 %v424
        %v426 = vperm.slane %v418, %v425
        %v427 = vrot.slane %v349, 4
        %v428 = vsel %vm365, 0.0, %v427
        %v430 = vunpack.c.l.s4 1983009808
        %v431 = vunpack.c.0.s8 %v430
        %v432 = vperm.slane %v349, %v431
        %v434 = vunpack.c.l.s4 1983009808
        %v435 = vunpack.c.0.s8 %v434
        %v436 = vperm.slane %v428, %v435
        %v437 = vrot.slane %v432, 4
        %v438 = vsel %vm365, %v437, %v422
        %v439 = vrot.slane %v422, 4
        %v440 = vsel %vm365, %v432, %v439
        %v442 = vunpack.c.l.s4 1934713408
        %v443 = vunpack.c.0.s8 %v442
        %v444 = vperm.slane %v438, %v443
        %v446 = vunpack.c.l.s4 1934713408
        %v447 = vunpack.c.0.s8 %v446
        %v448 = vperm.slane %v440, %v447
        %v449 = vrot.slane %v436, 4
        %v450 = vsel %vm365, %v449, %v426
        %v451 = vrot.slane %v426, 4
        %v452 = vsel %vm365, %v436, %v451
        %v454 = vunpack.c.l.s4 1934713408
        %v455 = vunpack.c.0.s8 %v454
        %v456 = vperm.slane %v450, %v455
        %v458 = vunpack.c.l.s4 1934713408
        %v459 = vunpack.c.0.s8 %v458
        %v460 = vperm.slane %v452, %v459
        %v461 = vrot.slane %v444, 4
        %v462 = vsel %vm365, 0.0, %v461
        %v463 = vrot.slane %v448, 4
        %v464 = vsel %vm365, 0.0, %v463
        %v465 = vrot.slane %v456, 4
        %v466 = vsel %vm365, 0.0, %v465
        %v467 = vrot.slane %v460, 4
        %v468 = vsel %vm365, 0.0, %v467
        %v469 = vrot.slane %v318, 4
        %v470 = vsel %vm365, 0.0, %v469
        %v472 = vunpack.c.l.s4 1983009808
        %v473 = vunpack.c.0.s8 %v472
        %v474 = vperm.slane %v318, %v473
        %v476 = vunpack.c.l.s4 1983009808
        %v477 = vunpack.c.0.s8 %v476
        %v478 = vperm.slane %v470, %v477
        %v479 = vrot.slane %v350, 4
        %v480 = vsel %vm365, 0.0, %v479
        %v482 = vunpack.c.l.s4 1983009808
        %v483 = vunpack.c.0.s8 %v482
        %v484 = vperm.slane %v350, %v483
        %v486 = vunpack.c.l.s4 1983009808
        %v487 = vunpack.c.0.s8 %v486
        %v488 = vperm.slane %v480, %v487
        %v489 = vrot.slane %v484, 4
        %v490 = vsel %vm365, %v489, %v474
        %v491 = vrot.slane %v474, 4
        %v492 = vsel %vm365, %v484, %v491
        %v494 = vunpack.c.l.s4 1934713408
        %v495 = vunpack.c.0.s8 %v494
        %v496 = vperm.slane %v490, %v495
        %v498 = vunpack.c.l.s4 1934713408
        %v499 = vunpack.c.0.s8 %v498
        %v500 = vperm.slane %v492, %v499
        %v501 = vrot.slane %v488, 4
        %v502 = vsel %vm365, %v501, %v478
        %v503 = vrot.slane %v478, 4
        %v504 = vsel %vm365, %v488, %v503
        %v506 = vunpack.c.l.s4 1934713408
        %v507 = vunpack.c.0.s8 %v506
        %v508 = vperm.slane %v502, %v507
        %v510 = vunpack.c.l.s4 1934713408
        %v511 = vunpack.c.0.s8 %v510
        %v512 = vperm.slane %v504, %v511
        %v513 = vrot.slane %v496, 4
        %v514 = vsel %vm365, 0.0, %v513
        %v515 = vrot.slane %v500, 4
        %v516 = vsel %vm365, 0.0, %v515
        %v517 = vrot.slane %v508, 4
        %v518 = vsel %vm365, 0.0, %v517
        %v519 = vrot.slane %v512, 4
        %v520 = vsel %vm365, 0.0, %v519
        %v521 = vrot.slane %v319, 4
        %v522 = vsel %vm365, 0.0, %v521
        %v524 = vunpack.c.l.s4 1983009808
        %v525 = vunpack.c.0.s8 %v524
        %v526 = vperm.slane %v319, %v525
        %v528 = vunpack.c.l.s4 1983009808
        %v529 = vunpack.c.0.s8 %v528
        %v530 = vperm.slane %v522, %v529
        %v531 = vrot.slane %v351, 4
        %v532 = vsel %vm365, 0.0, %v531
        %v534 = vunpack.c.l.s4 1983009808
        %v535 = vunpack.c.0.s8 %v534
        %v536 = vperm.slane %v351, %v535
        %v538 = vunpack.c.l.s4 1983009808
        %v539 = vunpack.c.0.s8 %v538
        %v540 = vperm.slane %v532, %v539
        %v541 = vrot.slane %v536, 4
        %v542 = vsel %vm365, %v541, %v526
        %v543 = vrot.slane %v526, 4
        %v544 = vsel %vm365, %v536, %v543
        %v546 = vunpack.c.l.s4 1934713408
        %v547 = vunpack.c.0.s8 %v546
        %v548 = vperm.slane %v542, %v547
        %v550 = vunpack.c.l.s4 1934713408
        %v551 = vunpack.c.0.s8 %v550
        %v552 = vperm.slane %v544, %v551
        %v553 = vrot.slane %v540, 4
        %v554 = vsel %vm365, %v553, %v530
        %v555 = vrot.slane %v530, 4
        %v556 = vsel %vm365, %v540, %v555
        %v558 = vunpack.c.l.s4 1934713408
        %v559 = vunpack.c.0.s8 %v558
        %v560 = vperm.slane %v554, %v559
        %v562 = vunpack.c.l.s4 1934713408
        %v563 = vunpack.c.0.s8 %v562
        %v564 = vperm.slane %v556, %v563
        %v565 = vrot.slane %v548, 4
        %v566 = vsel %vm365, 0.0, %v565
        %v567 = vrot.slane %v552, 4
        %v568 = vsel %vm365, 0.0, %v567
        %v569 = vrot.slane %v560, 4
        %v570 = vsel %vm365, 0.0, %v569
        %v571 = vrot.slane %v564, 4
        %v572 = vsel %vm365, 0.0, %v571
        %v573 = vrot.slane %v320, 4
        %v574 = vsel %vm365, 0.0, %v573
        %v576 = vunpack.c.l.s4 1983009808
        %v577 = vunpack.c.0.s8 %v576
        %v578 = vperm.slane %v320, %v577
        %v580 = vunpack.c.l.s4 1983009808
        %v581 = vunpack.c.0.s8 %v580
        %v582 = vperm.slane %v574, %v581
        %v583 = vrot.slane %v352, 4
        %v584 = vsel %vm365, 0.0, %v583
        %v586 = vunpack.c.l.s4 1983009808
        %v587 = vunpack.c.0.s8 %v586
        %v588 = vperm.slane %v352, %v587
        %v590 = vunpack.c.l.s4 1983009808
        %v591 = vunpack.c.0.s8 %v590
        %v592 = vperm.slane %v584, %v591
        %v593 = vrot.slane %v588, 4
        %v594 = vsel %vm365, %v593, %v578
        %v595 = vrot.slane %v578, 4
        %v596 = vsel %vm365, %v588, %v595
        %v598 = vunpack.c.l.s4 1934713408
        %v599 = vunpack.c.0.s8 %v598
        %v600 = vperm.slane %v594, %v599
        %v602 = vunpack.c.l.s4 1934713408
        %v603 = vunpack.c.0.s8 %v602
        %v604 = vperm.slane %v596, %v603
        %v605 = vrot.slane %v592, 4
        %v606 = vsel %vm365, %v605, %v582
        %v607 = vrot.slane %v582, 4
        %v608 = vsel %vm365, %v592, %v607
        %v610 = vunpack.c.l.s4 1934713408
        %v611 = vunpack.c.0.s8 %v610
        %v612 = vperm.slane %v606, %v611
        %v614 = vunpack.c.l.s4 1934713408
        %v615 = vunpack.c.0.s8 %v614
        %v616 = vperm.slane %v608, %v615
        %v617 = vrot.slane %v600, 4
        %v618 = vsel %vm365, 0.0, %v617
        %v619 = vrot.slane %v604, 4
        %v620 = vsel %vm365, 0.0, %v619
        %v621 = vrot.slane %v612, 4
        %v622 = vsel %vm365, 0.0, %v621
        %v623 = vrot.slane %v616, 4
        %v624 = vsel %vm365, 0.0, %v623
        %v625 = vrot.slane %v321, 4
        %v626 = vsel %vm365, 0.0, %v625
        %v628 = vunpack.c.l.s4 1983009808
        %v629 = vunpack.c.0.s8 %v628
        %v630 = vperm.slane %v321, %v629
        %v632 = vunpack.c.l.s4 1983009808
        %v633 = vunpack.c.0.s8 %v632
        %v634 = vperm.slane %v626, %v633
        %v635 = vrot.slane %v353, 4
        %v636 = vsel %vm365, 0.0, %v635
        %v638 = vunpack.c.l.s4 1983009808
        %v639 = vunpack.c.0.s8 %v638
        %v640 = vperm.slane %v353, %v639
        %v642 = vunpack.c.l.s4 1983009808
        %v643 = vunpack.c.0.s8 %v642
        %v644 = vperm.slane %v636, %v643
        %v645 = vrot.slane %v640, 4
        %v646 = vsel %vm365, %v645, %v630
        %v647 = vrot.slane %v630, 4
        %v648 = vsel %vm365, %v640, %v647
        %v650 = vunpack.c.l.s4 1934713408
        %v651 = vunpack.c.0.s8 %v650
        %v652 = vperm.slane %v646, %v651
        %v654 = vunpack.c.l.s4 1934713408
        %v655 = vunpack.c.0.s8 %v654
        %v656 = vperm.slane %v648, %v655
        %v657 = vrot.slane %v644, 4
        %v658 = vsel %vm365, %v657, %v634
        %v659 = vrot.slane %v634, 4
        %v660 = vsel %vm365, %v644, %v659
        %v662 = vunpack.c.l.s4 1934713408
        %v663 = vunpack.c.0.s8 %v662
        %v664 = vperm.slane %v658, %v663
        %v666 = vunpack.c.l.s4 1934713408
        %v667 = vunpack.c.0.s8 %v666
        %v668 = vperm.slane %v660, %v667
        %v669 = vrot.slane %v652, 4
        %v670 = vsel %vm365, 0.0, %v669
        %v671 = vrot.slane %v656, 4
        %v672 = vsel %vm365, 0.0, %v671
        %v673 = vrot.slane %v664, 4
        %v674 = vsel %vm365, 0.0, %v673
        %v675 = vrot.slane %v668, 4
        %v676 = vsel %vm365, 0.0, %v675
        %v677 = vrot.slane %v322, 4
        %v678 = vsel %vm365, 0.0, %v677
        %v680 = vunpack.c.l.s4 1983009808
        %v681 = vunpack.c.0.s8 %v680
        %v682 = vperm.slane %v322, %v681
        %v684 = vunpack.c.l.s4 1983009808
        %v685 = vunpack.c.0.s8 %v684
        %v686 = vperm.slane %v678, %v685
        %v687 = vrot.slane %v354, 4
        %v688 = vsel %vm365, 0.0, %v687
        %v690 = vunpack.c.l.s4 1983009808
        %v691 = vunpack.c.0.s8 %v690
        %v692 = vperm.slane %v354, %v691
        %v694 = vunpack.c.l.s4 1983009808
        %v695 = vunpack.c.0.s8 %v694
        %v696 = vperm.slane %v688, %v695
        %v697 = vrot.slane %v692, 4
        %v698 = vsel %vm365, %v697, %v682
        %v699 = vrot.slane %v682, 4
        %v700 = vsel %vm365, %v692, %v699
        %v702 = vunpack.c.l.s4 1934713408
        %v703 = vunpack.c.0.s8 %v702
        %v704 = vperm.slane %v698, %v703
        %v706 = vunpack.c.l.s4 1934713408
        %v707 = vunpack.c.0.s8 %v706
        %v708 = vperm.slane %v700, %v707
        %v709 = vrot.slane %v696, 4
        %v710 = vsel %vm365, %v709, %v686
        %v711 = vrot.slane %v686, 4
        %v712 = vsel %vm365, %v696, %v711
        %v714 = vunpack.c.l.s4 1934713408
        %v715 = vunpack.c.0.s8 %v714
        %v716 = vperm.slane %v710, %v715
        %v718 = vunpack.c.l.s4 1934713408
        %v719 = vunpack.c.0.s8 %v718
        %v720 = vperm.slane %v712, %v719
        %v721 = vrot.slane %v704, 4
        %v722 = vsel %vm365, 0.0, %v721
        %v723 = vrot.slane %v708, 4
        %v724 = vsel %vm365, 0.0, %v723
        %v725 = vrot.slane %v716, 4
        %v726 = vsel %vm365, 0.0, %v725
        %v727 = vrot.slane %v720, 4
        %v728 = vsel %vm365, 0.0, %v727
        %v729 = vrot.slane %v323, 4
        %v730 = vsel %vm365, 0.0, %v729
        %v732 = vunpack.c.l.s4 1983009808
        %v733 = vunpack.c.0.s8 %v732
        %v734 = vperm.slane %v323, %v733
        %v736 = vunpack.c.l.s4 1983009808
        %v737 = vunpack.c.0.s8 %v736
        %v738 = vperm.slane %v730, %v737
        %v739 = vrot.slane %v355, 4
        %v740 = vsel %vm365, 0.0, %v739
        %v742 = vunpack.c.l.s4 1983009808
        %v743 = vunpack.c.0.s8 %v742
        %v744 = vperm.slane %v355, %v743
        %v746 = vunpack.c.l.s4 1983009808
        %v747 = vunpack.c.0.s8 %v746
        %v748 = vperm.slane %v740, %v747
        %v749 = vrot.slane %v744, 4
        %v750 = vsel %vm365, %v749, %v734
        %v751 = vrot.slane %v734, 4
        %v752 = vsel %vm365, %v744, %v751
        %v754 = vunpack.c.l.s4 1934713408
        %v755 = vunpack.c.0.s8 %v754
        %v756 = vperm.slane %v750, %v755
        %v758 = vunpack.c.l.s4 1934713408
        %v759 = vunpack.c.0.s8 %v758
        %v760 = vperm.slane %v752, %v759
        %v761 = vrot.slane %v748, 4
        %v762 = vsel %vm365, %v761, %v738
        %v763 = vrot.slane %v738, 4
        %v764 = vsel %vm365, %v748, %v763
        %v766 = vunpack.c.l.s4 1934713408
        %v767 = vunpack.c.0.s8 %v766
        %v768 = vperm.slane %v762, %v767
        %v770 = vunpack.c.l.s4 1934713408
        %v771 = vunpack.c.0.s8 %v770
        %v772 = vperm.slane %v764, %v771
        %v773 = vrot.slane %v756, 4
        %v774 = vsel %vm365, 0.0, %v773
        %v775 = vrot.slane %v760, 4
        %v776 = vsel %vm365, 0.0, %v775
        %v777 = vrot.slane %v768, 4
        %v778 = vsel %vm365, 0.0, %v777
        %v779 = vrot.slane %v772, 4
        %v780 = vsel %vm365, 0.0, %v779
        %782 = vrot.lane.b32.xlu0 %v410, 4
        %v783 = vpop.permute.xlu0 %782
        %786 = vrot.lane.b32.xlu0 %v396, 8
        %v787 = vpop.permute.xlu0 %786
        %790 = vrot.lane.b32.xlu0 %v412, 12
        %v791 = vpop.permute.xlu0 %790
        %794 = vrot.lane.b32.xlu0 %v404, 16
        %v795 = vpop.permute.xlu0 %794
        %798 = vrot.lane.b32.xlu0 %v414, 20
        %v799 = vpop.permute.xlu0 %798
        %802 = vrot.lane.b32.xlu0 %v408, 24
        %v803 = vpop.permute.xlu0 %802
        %806 = vrot.lane.b32.xlu0 %v416, 28
        %v807 = vpop.permute.xlu0 %806
        %810 = vrot.lane.b32.xlu0 %v444, 32
        %v811 = vpop.permute.xlu0 %810
        %814 = vrot.lane.b32.xlu0 %v462, 36
        %v815 = vpop.permute.xlu0 %814
        %818 = vrot.lane.b32.xlu0 %v448, 40
        %v819 = vpop.permute.xlu0 %818
        %822 = vrot.lane.b32.xlu0 %v464, 44
        %v823 = vpop.permute.xlu0 %822
        %826 = vrot.lane.b32.xlu0 %v456, 48
        %v827 = vpop.permute.xlu0 %826
        %830 = vrot.lane.b32.xlu0 %v466, 52
        %v831 = vpop.permute.xlu0 %830
        %834 = vrot.lane.b32.xlu0 %v460, 56
        %v835 = vpop.permute.xlu0 %834
        %838 = vrot.lane.b32.xlu0 %v468, 60
        %v839 = vpop.permute.xlu0 %838
        %842 = vrot.lane.b32.xlu0 %v496, 64
        %v843 = vpop.permute.xlu0 %842
        %846 = vrot.lane.b32.xlu0 %v514, 68
        %v847 = vpop.permute.xlu0 %846
        %850 = vrot.lane.b32.xlu0 %v500, 72
        %v851 = vpop.permute.xlu0 %850
        %854 = vrot.lane.b32.xlu0 %v516, 76
        %v855 = vpop.permute.xlu0 %854
        %858 = vrot.lane.b32.xlu0 %v508, 80
        %v859 = vpop.permute.xlu0 %858
        %862 = vrot.lane.b32.xlu0 %v518, 84
        %v863 = vpop.permute.xlu0 %862
        %866 = vrot.lane.b32.xlu0 %v512, 88
        %v867 = vpop.permute.xlu0 %866
        %870 = vrot.lane.b32.xlu0 %v520, 92
        %v871 = vpop.permute.xlu0 %870
        %874 = vrot.lane.b32.xlu0 %v548, 96
        %v875 = vpop.permute.xlu0 %874
        %878 = vrot.lane.b32.xlu0 %v566, 100
        %v879 = vpop.permute.xlu0 %878
        %882 = vrot.lane.b32.xlu0 %v552, 104
        %v883 = vpop.permute.xlu0 %882
        %886 = vrot.lane.b32.xlu0 %v568, 108
        %v887 = vpop.permute.xlu0 %886
        %890 = vrot.lane.b32.xlu0 %v560, 112
        %v891 = vpop.permute.xlu0 %890
        %894 = vrot.lane.b32.xlu0 %v570, 116
        %v895 = vpop.permute.xlu0 %894
        %898 = vrot.lane.b32.xlu0 %v564, 120
        %v899 = vpop.permute.xlu0 %898
        %902 = vrot.lane.b32.xlu0 %v572, 124
        %v903 = vpop.permute.xlu0 %902
        %906 = vrot.lane.b32.xlu0 %v618, 4
        %v907 = vpop.permute.xlu0 %906
        %910 = vrot.lane.b32.xlu0 %v604, 8
        %v911 = vpop.permute.xlu0 %910
        %914 = vrot.lane.b32.xlu0 %v620, 12
        %v915 = vpop.permute.xlu0 %914
        %918 = vrot.lane.b32.xlu0 %v612, 16
        %v919 = vpop.permute.xlu0 %918
        %922 = vrot.lane.b32.xlu0 %v622, 20
        %v923 = vpop.permute.xlu0 %922
        %926 = vrot.lane.b32.xlu0 %v616, 24
        %v927 = vpop.permute.xlu0 %926
        %930 = vrot.lane.b32.xlu0 %v624, 28
        %v931 = vpop.permute.xlu0 %930
        %934 = vrot.lane.b32.xlu0 %v652, 32
        %v935 = vpop.permute.xlu0 %934
        %938 = vrot.lane.b32.xlu0 %v670, 36
        %v939 = vpop.permute.xlu0 %938
        %942 = vrot.lane.b32.xlu0 %v656, 40
        %v943 = vpop.permute.xlu0 %942
        %946 = vrot.lane.b32.xlu0 %v672, 44
        %v947 = vpop.permute.xlu0 %946
        %950 = vrot.lane.b32.xlu0 %v664, 48
        %v951 = vpop.permute.xlu0 %950
        %954 = vrot.lane.b32.xlu0 %v674, 52
        %v955 = vpop.permute.xlu0 %954
        %958 = vrot.lane.b32.xlu0 %v668, 56
        %v959 = vpop.permute.xlu0 %958
        %962 = vrot.lane.b32.xlu0 %v676, 60
        %v963 = vpop.permute.xlu0 %962
        %966 = vrot.lane.b32.xlu0 %v704, 64
        %v967 = vpop.permute.xlu0 %966
        %970 = vrot.lane.b32.xlu0 %v722, 68
        %v971 = vpop.permute.xlu0 %970
        %974 = vrot.lane.b32.xlu0 %v708, 72
        %v975 = vpop.permute.xlu0 %974
        %978 = vrot.lane.b32.xlu0 %v724, 76
        %v979 = vpop.permute.xlu0 %978
        %982 = vrot.lane.b32.xlu0 %v716, 80
        %v983 = vpop.permute.xlu0 %982
        %986 = vrot.lane.b32.xlu0 %v726, 84
        %v987 = vpop.permute.xlu0 %986
        %990 = vrot.lane.b32.xlu0 %v720, 88
        %v991 = vpop.permute.xlu0 %990
        %994 = vrot.lane.b32.xlu0 %v728, 92
        %v995 = vpop.permute.xlu0 %994
        %998 = vrot.lane.b32.xlu0 %v756, 96
        %v999 = vpop.permute.xlu0 %998
        %1002 = vrot.lane.b32.xlu0 %v774, 100
        %v1003 = vpop.permute.xlu0 %1002
        %1006 = vrot.lane.b32.xlu0 %v760, 104
        %v1007 = vpop.permute.xlu0 %1006
        %1010 = vrot.lane.b32.xlu0 %v776, 108
        %v1011 = vpop.permute.xlu0 %1010
        %1014 = vrot.lane.b32.xlu0 %v768, 112
        %v1015 = vpop.permute.xlu0 %1014
        %1018 = vrot.lane.b32.xlu0 %v778, 116
        %v1019 = vpop.permute.xlu0 %1018
        %1022 = vrot.lane.b32.xlu0 %v772, 120
        %v1023 = vpop.permute.xlu0 %1022
        %1026 = vrot.lane.b32.xlu0 %v780, 124
        %v1027 = vpop.permute.xlu0 %1026
        %vm1029 = vcmask 31744
        %v1030 = vsel %vm1029, %v392, %v783
        %vm1031 = vcmask 64512
        %v1032 = vsel %vm1031, %v1030, %v787
        %vm1033 = vcmask 97280
        %v1034 = vsel %vm1033, %v1032, %v791
        %vm1035 = vcmask 130048
        %v1036 = vsel %vm1035, %v1034, %v795
        %vm1037 = vcmask 162816
        %v1038 = vsel %vm1037, %v1036, %v799
        %vm1039 = vcmask 195584
        %v1040 = vsel %vm1039, %v1038, %v803
        %vm1041 = vcmask 228352
        %v1042 = vsel %vm1041, %v1040, %v807
        %vm1043 = vcmask 261120
        %v1044 = vsel %vm1043, %v1042, %v811
        %vm1045 = vcmask 293888
        %v1046 = vsel %vm1045, %v1044, %v815
        %vm1047 = vcmask 326656
        %v1048 = vsel %vm1047, %v1046, %v819
        %vm1049 = vcmask 359424
        %v1050 = vsel %vm1049, %v1048, %v823
        %vm1051 = vcmask 392192
        %v1052 = vsel %vm1051, %v1050, %v827
        %vm1053 = vcmask 424960
        %v1054 = vsel %vm1053, %v1052, %v831
        %vm1055 = vcmask 457728
        %v1056 = vsel %vm1055, %v1054, %v835
        %vm1057 = vcmask 490496
        %v1058 = vsel %vm1057, %v1056, %v839
        %vm1059 = vcmask 523264
        %v1060 = vsel %vm1059, %v1058, %v843
        %vm1061 = vcmask 556032
        %v1062 = vsel %vm1061, %v1060, %v847
        %vm1063 = vcmask 588800
        %v1064 = vsel %vm1063, %v1062, %v851
        %vm1065 = vcmask 621568
        %v1066 = vsel %vm1065, %v1064, %v855
        %vm1067 = vcmask 654336
        %v1068 = vsel %vm1067, %v1066, %v859
        %vm1069 = vcmask 687104
        %v1070 = vsel %vm1069, %v1068, %v863
        %vm1071 = vcmask 719872
        %v1072 = vsel %vm1071, %v1070, %v867
        %vm1073 = vcmask 752640
        %v1074 = vsel %vm1073, %v1072, %v871
        %vm1075 = vcmask 785408
        %v1076 = vsel %vm1075, %v1074, %v875
        %vm1077 = vcmask 818176
        %v1078 = vsel %vm1077, %v1076, %v879
        %vm1079 = vcmask 850944
        %v1080 = vsel %vm1079, %v1078, %v883
        %vm1081 = vcmask 883712
        %v1082 = vsel %vm1081, %v1080, %v887
        %vm1083 = vcmask 916480
        %v1084 = vsel %vm1083, %v1082, %v891
        %vm1085 = vcmask 949248
        %v1086 = vsel %vm1085, %v1084, %v895
        %vm1087 = vcmask 982016
        %v1088 = vsel %vm1087, %v1086, %v899
        %vm1089 = vcmask 1014784
        %v1090 = vsel %vm1089, %v1088, %v903
        %v1091 = vsel %vm1029, %v600, %v907
        %v1092 = vsel %vm1031, %v1091, %v911
        %v1093 = vsel %vm1033, %v1092, %v915
        %v1094 = vsel %vm1035, %v1093, %v919
        %v1095 = vsel %vm1037, %v1094, %v923
        %v1096 = vsel %vm1039, %v1095, %v927
        %v1097 = vsel %vm1041, %v1096, %v931
        %v1098 = vsel %vm1043, %v1097, %v935
        %v1099 = vsel %vm1045, %v1098, %v939
        %v1100 = vsel %vm1047, %v1099, %v943
        %v1101 = vsel %vm1049, %v1100, %v947
        %v1102 = vsel %vm1051, %v1101, %v951
        %v1103 = vsel %vm1053, %v1102, %v955
        %v1104 = vsel %vm1055, %v1103, %v959
        %v1105 = vsel %vm1057, %v1104, %v963
        %v1106 = vsel %vm1059, %v1105, %v967
        %v1107 = vsel %vm1061, %v1106, %v971
        %v1108 = vsel %vm1063, %v1107, %v975
        %v1109 = vsel %vm1065, %v1108, %v979
        %v1110 = vsel %vm1067, %v1109, %v983
        %v1111 = vsel %vm1069, %v1110, %v987
        %v1112 = vsel %vm1071, %v1111, %v991
        %v1113 = vsel %vm1073, %v1112, %v995
        %v1114 = vsel %vm1075, %v1113, %v999
        %v1115 = vsel %vm1077, %v1114, %v1003
        %v1116 = vsel %vm1079, %v1115, %v1007
        %v1117 = vsel %vm1081, %v1116, %v1011
        %v1118 = vsel %vm1083, %v1117, %v1015
        %v1119 = vsel %vm1085, %v1118, %v1019
        %v1120 = vsel %vm1087, %v1119, %v1023
        %v1121 = vsel %vm1089, %v1120, %v1027
        %v1124 = vrot.slane %v1121, 6
        %vm1125 = vcmask 1041408
        %v1126 = vsel %vm1125, %v1090, %v1124
        %1128 = vst [vmem:[%s192] sm:$0xf] %v1126
        %s1129 = sand.u32 %s79, 1
        %s1130 = scalar_lea.sflag [#allocation4], %s1129
        %s1131 = sand.u32 %s79, 1
        %s1132 = smul.addr %s1131, 4
        %s1133 = scalar_lea.vmem [#allocation5], %s1132
        // Predicated region
        $region29: #{tpu_custom_call.1} parent=23 // pred_check
          %p1134 = pneg %p89
        $region30: #{tpu_custom_call.1} parent=23 // pred_check_branch
          %1136 = sbr.rel (%p1134) target = $region32
        $region31: #{tpu_custom_call.1} parent=23 // pred_region
          %1138 = vsyncadd %s1130, 0
          %s1139 = smul.addr %s25, 2
          %s1140 = smul.addr %s24, 4
          %s1141 = sadd.s32 %s1139, %s1140
          %s1142 = smul.addr %s23, 8
          %s1143 = sadd.s32 %s1141, %s1142
          %s1144 = smul.addr %s1143, 2
          %s1145 = scalar_lea.hbm %s1, %s1144
          %s1147 = sshll.u32 %s1133, 4
          %s1148 = int_to_ptr.vmem [resolvable:$true] %s1147
          %s1149 = sshll.u32 %s1145, 4
          %s1150 = int_to_ptr.hbm [resolvable:$true] %s1149
          %1152 = dma.vmem_to_hbm [thread:$0]  %s1148, 64, %s1150, %s1130
        $region32: #{tpu_custom_call.1} parent=23 // pred_fallthru
          _
      $region24: #{tpu_custom_call.1} parent=5 // pred_fallthru
        _
      %p1153 = scmp.le.s32.totalorder 2, %s13
      // Predicated region
      $region33: #{tpu_custom_call.1} parent=5 // pred_check
        %p1154 = pneg %p1153
      $region34: #{tpu_custom_call.1} parent=5 // pred_check_branch
        %1156 = sbr.rel (%p1154) target = $region36
      $region35: #{tpu_custom_call.1} parent=5 // pred_region
        %s1157 = ssub.s32 %s13, 2
        // Predicated region
        $region37: #{tpu_custom_call.1} parent=35 // pred_check
          %p1158 = pneg %p95
        $region38: #{tpu_custom_call.1} parent=35 // pred_check_branch
          %1160 = sbr.rel (%p1158) target = $region40
        $region39: #{tpu_custom_call.1} parent=35 // pred_region
          %s1161 = sand.u32 %s80, 1
          %s1162 = scalar_lea.sflag [#allocation4], %s1161
          %s1163 = sand.u32 %s80, 1
          %s1164 = smul.addr %s1163, 4
          %s1165 = scalar_lea.vmem [#allocation5], %s1164
          %1167 = dma.done %s1162, 64
        $region40: #{tpu_custom_call.1} parent=35 // pred_fallthru
          _
      $region36: #{tpu_custom_call.1} parent=5 // pred_fallthru
        _
    $region6: #{tpu_custom_call.1} parent=1 // loop_footer
      %s17 = sadd.s32 1, %s13
    $region7: #{tpu_custom_call.1} parent=1 // loop_footer_branch
      %12 = sbr.rel target = $region3
    $region8: #{tpu_custom_call.1} parent=1 // loop_exit
      _
    %1168 = vsyncpa [#allocation3], 1
    %s1169 = scalar_lea.sflag [#allocation3], 1
    %1170 = vsyncpa %s1169, 1
    %1171 = vsyncpa [#allocation4], 1
    %s1172 = scalar_lea.sflag [#allocation4], 1
    %1173 = vsyncpa %s1172, 1

</llo_original>
